<compile_context>
chip_gen: v7x
topology: tpu7x:2x2x1
jax: 0.10.0
libtpu: 0.0.40
codegen_flags: <defaults>
</compile_context>

<pallas_src>
import functools

import jax
import jax.numpy as jnp
from jax.experimental import pallas as pl
from jax.experimental.pallas import tpu as pltpu


# ---------------------------------------------------------------------------
# Fused kernel: conv1 -> bn1 -> relu -> conv2 -> bn2 -> +res -> relu + counts
# ---------------------------------------------------------------------------
def _basic_block_kernel(x_ref, w1_ref, w2_ref, s1_ref, b1_ref, s2_ref, b2_ref,
                        out_ref, zeros_ref, xpf_ref, *, H, W, C, B, L):
    HW = H * W
    BHW = B * HW

    # One-time halo zeroing (determinism only): with the per-tap masks below
    # no halo value can ever reach the matmul, so correctness does not depend
    # on this (also safe under a megacore parallel split of the grid axis).
    @pl.when(pl.program_id(0) == 0)
    def _():
        xpf_ref[:, :L] = jnp.zeros((C, L), jnp.bfloat16)
        xpf_ref[:, L + BHW:] = jnp.zeros((C, L), jnp.bfloat16)

    # ---- hoisted edge masks (built once, reused by both convs / all taps) --
    q = jax.lax.broadcasted_iota(jnp.int32, (C, BHW), 1)   # lane index
    if (W & (W - 1)) == 0 and (H & (H - 1)) == 0:
        shift_w = W.bit_length() - 1
        col = q & (W - 1)
        row = (q >> shift_w) & (H - 1)
    else:  # generic fallback
        col = q % W
        row = (q // W) % H
    not_l = col > 0
    not_r = col < W - 1
    not_t = row > 0
    not_b = row < H - 1
    tap_mask = {
        (0, 0): jnp.logical_and(not_t, not_l),
        (0, 1): not_t,
        (0, 2): jnp.logical_and(not_t, not_r),
        (1, 0): not_l,
        (1, 1): None,
        (1, 2): not_r,
        (2, 0): jnp.logical_and(not_b, not_l),
        (2, 1): not_b,
        (2, 2): jnp.logical_and(not_b, not_r),
    }

    def conv3x3(w_ref):
        """3x3 SAME conv as one (C, 9C) x (9C, B*HW) bf16 MXU matmul."""
        xpf = xpf_ref[...]                               # (C, 2L + BHW) bf16
        taps = []
        for dy in range(3):
            for dx in range(3):
                off = L + (dy - 1) * W + (dx - 1)        # static lane offset
                v = xpf[:, off:off + BHW]                # (C, BHW) bf16
                m = tap_mask[(dy, dx)]
                if m is not None:
                    v = jnp.where(m, v, 0)               # kill out-of-image
                taps.append(v)
        patches = jnp.concatenate(taps, axis=0)          # (9C, BHW) im2col
        return jnp.dot(w_ref[...], patches,
                       preferred_element_type=jnp.float32)   # (C, BHW) f32

    # ---- conv1 -> BN1 -> ReLU -> zero count --------------------------------
    for b in range(B):                                   # aligned (C, HW) stores
        xpf_ref[:, L + b * HW:L + (b + 1) * HW] = x_ref[b].astype(jnp.bfloat16)
    h = conv3x3(w1_ref) * s1_ref[...] + b1_ref[...]      # (C,1) affine broadcast
    h = jnp.maximum(h, 0.0)
    z1 = jnp.sum(jnp.where(h == 0.0, 1.0, 0.0))

    # ---- conv2 -> BN2 (h never leaves VMEM) --------------------------------
    xpf_ref[:, L:L + BHW] = h.astype(jnp.bfloat16)       # one aligned store
    y = conv3x3(w2_ref) * s2_ref[...] + b2_ref[...]      # (C, BHW) f32

    # ---- + residual (reloaded from resident x block) -> ReLU -> count ------
    z2 = jnp.float32(0.0)
    for b in range(B):
        yb = jnp.maximum(y[:, b * HW:(b + 1) * HW] + x_ref[b], 0.0)
        out_ref[b] = yb                                   # lane-dense store
        z2 = z2 + jnp.sum(jnp.where(yb == 0.0, 1.0, 0.0))

    zeros_ref[0, 0] = z1.astype(jnp.int32)
    zeros_ref[0, 1] = z2.astype(jnp.int32)


# ---------------------------------------------------------------------------
# Helper: images per grid step (widen MXU RHS, fewer / fatter steps)
# ---------------------------------------------------------------------------
def _pick_images_per_step(N, C, HW):
    """Largest divisor B of N whose per-step working set fits a small VMEM
    budget.  Fewer, fatter steps amortize weight pushes into the MXU and the
    ~600-cycle per-step pipeline overhead (v5e/v6e: single TensorCore).
    On v7x one may prefer capping B at N//2 so both TensorCores get work."""
    budget = 8 << 20                                      # conservative bytes
    for b in range(N, 0, -1):
        if N % b:
            continue
        patches = 9 * C * b * HW * 2                      # bf16 im2col
        scratch = C * (b * HW + 256) * 2                  # bf16 padded scratch
        blocks = 2 * (2 * b * C * HW * 4)                 # dbl-buffered x & out
        if patches + scratch + blocks <= budget:
            return b
    return 1


# ---------------------------------------------------------------------------
# Wrapper (mirrors BasicBlock.forward for stride=1, downsample=None)
# ---------------------------------------------------------------------------
def basic_block_forward(x_nchw, params, images_per_step=None):
    """Returns (y_nchw, zeros_list, sizes_list) like BasicBlock.forward."""
    N, C, H, W = x_nchw.shape
    HW = H * W
    L = 128                                               # lane-aligned halo

    B = images_per_step or _pick_images_per_step(N, C, HW)
    assert N % B == 0, "images_per_step must divide the batch"
    G = N // B

    # Free (bitcast) reshape: NCHW -> (N, C, H*W); no transpose, no pad.
    x_flat = x_nchw.reshape(N, C, HW).astype(jnp.float32)

    # Weights OIHW -> (Cout, 9*Cin) with K ordered (dy, dx, ci); bf16 for MXU.
    def prep_w(w_oihw):
        return jnp.transpose(w_oihw, (0, 2, 3, 1)).reshape(C, 9 * C).astype(
            jnp.bfloat16)

    w1 = prep_w(params["w1"])
    w2 = prep_w(params["w2"])
    s1 = params["scale1"].astype(jnp.float32).reshape(C, 1)
    b1 = params["bias1"].astype(jnp.float32).reshape(C, 1)
    s2 = params["scale2"].astype(jnp.float32).reshape(C, 1)
    b2 = params["bias2"].astype(jnp.float32).reshape(C, 1)

    kernel = functools.partial(_basic_block_kernel, H=H, W=W, C=C, B=B, L=L)

    out_flat, zeros = pl.pallas_call(
        kernel,
        out_shape=(jax.ShapeDtypeStruct((N, C, HW), jnp.float32),
                   jax.ShapeDtypeStruct((G, 2), jnp.int32)),
        grid=(G,),
        in_specs=[
            pl.BlockSpec((B, C, HW), lambda g: (g, 0, 0)),    # x (lane-dense)
            pl.BlockSpec((C, 9 * C), lambda g: (0, 0)),       # w1 (bf16)
            pl.BlockSpec((C, 9 * C), lambda g: (0, 0)),       # w2 (bf16)
            pl.BlockSpec((C, 1), lambda g: (0, 0)),           # scale1
            pl.BlockSpec((C, 1), lambda g: (0, 0)),           # bias1
            pl.BlockSpec((C, 1), lambda g: (0, 0)),           # scale2
            pl.BlockSpec((C, 1), lambda g: (0, 0)),           # bias2
        ],
        out_specs=(
            pl.BlockSpec((B, C, HW), lambda g: (g, 0, 0)),    # y (lane-dense)
            pl.BlockSpec((1, 2), lambda g: (g, 0),
                         memory_space=pltpu.MemorySpace.SMEM),
        ),
        scratch_shapes=[pltpu.VMEM((C, 2 * L + B * HW), jnp.bfloat16)],
        compiler_params=pltpu.CompilerParams(
            dimension_semantics=("parallel",)),
    )(x_flat, w1, w2, s1, b1, s2, b2)

    y_nchw = out_flat.reshape(N, C, H, W)                     # free reshape
    zsum = jnp.sum(zeros, axis=0)
    zeros_list = [zsum[0], zsum[1]]
    sizes_list = [N * C * H * W, N * C * H * W]
    return y_nchw, zeros_list, sizes_list


# ---------------------------------------------------------------------------
# Pure-JAX reference (sanity check)
# ---------------------------------------------------------------------------
def _ref_forward(x, p):
    def conv(inp, w):
        return jax.lax.conv_general_dilated(
            inp, w, window_strides=(1, 1), padding="SAME",
            dimension_numbers=("NCHW", "OIHW", "NCHW"))

    def bn(t, s, b):
        return t * s[None, :, None, None] + b[None, :, None, None]

    h = jnp.maximum(bn(conv(x, p["w1"]), p["scale1"], p["bias1"]), 0.0)
    y = bn(conv(h, p["w2"]), p["scale2"], p["bias2"]) + x
    return jnp.maximum(y, 0.0)


# ---------------------------------------------------------------------------
# Main
# ---------------------------------------------------------------------------
if __name__ == "__main__":
    N, C, H, W = 2, 32, 16, 16          # inplanes = planes = 32, stride = 1
    planes = C
    eps = 1e-5

    key = jax.random.PRNGKey(0)
    ks = jax.random.split(key, 12)

    x = jax.random.normal(ks[0], (N, C, H, W), jnp.float32)

    # conv weights in OIHW (PyTorch layout), deterministic synthetic values
    w1 = jax.random.normal(ks[1], (planes, C, 3, 3), jnp.float32) / jnp.sqrt(9.0 * C)
    w2 = jax.random.normal(ks[2], (planes, planes, 3, 3), jnp.float32) / jnp.sqrt(9.0 * planes)

    # BatchNorm (eval mode) parameters -> folded affine
    g1 = jax.random.uniform(ks[3], (planes,), minval=0.5, maxval=1.5)
    b1 = jax.random.normal(ks[4], (planes,)) * 0.1
    m1 = jax.random.normal(ks[5], (planes,)) * 0.1
    v1 = jax.random.uniform(ks[6], (planes,), minval=0.5, maxval=1.5)
    g2 = jax.random.uniform(ks[7], (planes,), minval=0.5, maxval=1.5)
    b2 = jax.random.normal(ks[8], (planes,)) * 0.1
    m2 = jax.random.normal(ks[9], (planes,)) * 0.1
    v2 = jax.random.uniform(ks[10], (planes,), minval=0.5, maxval=1.5)

    scale1 = g1 / jnp.sqrt(v1 + eps)
    bias1 = b1 - m1 * scale1
    scale2 = g2 / jnp.sqrt(v2 + eps)
    bias2 = b2 - m2 * scale2

    params = dict(w1=w1, w2=w2, scale1=scale1, bias1=bias1,
                  scale2=scale2, bias2=bias2)

    y, zeros, sizes = basic_block_forward(x, params)
    y = jax.block_until_ready(y)
    zeros = [int(z) for z in jax.block_until_ready(zeros)]

    # Sanity check against a pure-JAX f32 reference.  Tolerance accounts for
    # bf16 matmul operands (f32 accumulation); note conv2 consumes a bf16 h,
    # so zero counts near the ReLU threshold may differ from a pure-f32 run
    # by a few elements.
    y_ref = jax.block_until_ready(_ref_forward(x, params))
    assert y.shape == (N, planes, H, W)
    assert jnp.allclose(y, y_ref, atol=5e-2, rtol=5e-2), "mismatch vs reference"
    assert sizes == [N * planes * H * W, N * planes * H * W]
    assert 0 <= zeros[0] <= sizes[0] and 0 <= zeros[1] <= sizes[1]

    print("KERNEL_OK")
</pallas_src>

<mosaic_0001>
module attributes {stable_mosaic.version = 11 : i64} {
  func.func @_basic_block_kernel(%arg0: i32, %arg1: memref<2x32x256xf32, #tpu.memory_space<vmem>>, %arg2: memref<32x288xbf16, #tpu.memory_space<vmem>>, %arg3: memref<32x288xbf16, #tpu.memory_space<vmem>>, %arg4: memref<32x1xf32, #tpu.memory_space<vmem>>, %arg5: memref<32x1xf32, #tpu.memory_space<vmem>>, %arg6: memref<32x1xf32, #tpu.memory_space<vmem>>, %arg7: memref<32x1xf32, #tpu.memory_space<vmem>>, %arg8: memref<2x32x256xf32, #tpu.memory_space<vmem>>, %arg9: memref<1x2xi32, #tpu.memory_space<smem>>, %arg10: memref<32x768xbf16, #tpu.memory_space<vmem>>) attributes {dimension_semantics = [#tpu.dimension_semantics<parallel>], iteration_bounds = array<i64: 1>, scalar_prefetch = 0 : i64, scratch_operands = 1 : i64, tpu.core_type = #tpu.core_type<tc>, window_params = [{transform_indices = @transform_0, window_bounds = array<i64: 2, 32, 256>}, {pipeline_mode = #tpu.pipeline_mode<synchronous>, transform_indices = @transform_1, window_bounds = array<i64: 32, 288>}, {pipeline_mode = #tpu.pipeline_mode<synchronous>, transform_indices = @transform_2, window_bounds = array<i64: 32, 288>}, {pipeline_mode = #tpu.pipeline_mode<synchronous>, transform_indices = @transform_3, window_bounds = array<i64: 32, 1>}, {pipeline_mode = #tpu.pipeline_mode<synchronous>, transform_indices = @transform_4, window_bounds = array<i64: 32, 1>}, {pipeline_mode = #tpu.pipeline_mode<synchronous>, transform_indices = @transform_5, window_bounds = array<i64: 32, 1>}, {pipeline_mode = #tpu.pipeline_mode<synchronous>, transform_indices = @transform_6, window_bounds = array<i64: 32, 1>}, {transform_indices = @transform_7, window_bounds = array<i64: 2, 32, 256>}, {transform_indices = @transform_8, window_bounds = array<i64: 1, 2>}]} {
    %c0_i32 = arith.constant 0 : i32
    %0 = arith.cmpi eq, %arg0, %c0_i32 : i32
    %1 = arith.extui %0 : i1 to i32
    %c0_i32_0 = arith.constant 0 : i32
    %2 = arith.cmpi ne, %1, %c0_i32_0 : i32
    scf.if %2 {
      %cst_79 = arith.constant 0.000000e+00 : bf16
      %171 = vector.broadcast %cst_79 : bf16 to vector<32x128xbf16>
      %c0_80 = arith.constant 0 : index
      %c0_81 = arith.constant 0 : index
      %172 = vector.load %arg10[%c0_80, %c0_81] : memref<32x768xbf16, #tpu.memory_space<vmem>>, vector<32x128xbf16>
      tpu.vector_store %arg10[%c0_80, %c0_81], %171 {strides = array<i32>} : memref<32x768xbf16, #tpu.memory_space<vmem>>, vector<32x128xbf16>,
      %cst_82 = arith.constant 0.000000e+00 : bf16
      %173 = vector.broadcast %cst_82 : bf16 to vector<32x128xbf16>
      %c0_83 = arith.constant 0 : index
      %c640 = arith.constant 640 : index
      %174 = vector.load %arg10[%c0_83, %c640] : memref<32x768xbf16, #tpu.memory_space<vmem>>, vector<32x128xbf16>
      tpu.vector_store %arg10[%c0_83, %c640], %173 {strides = array<i32>} : memref<32x768xbf16, #tpu.memory_space<vmem>>, vector<32x128xbf16>,
    } else {
    }
    %3 = tpu.iota {dimensions = array<i32: 1>} : vector<32x512xi32>
    %c15_i32 = arith.constant 15 : i32
    %4 = vector.broadcast %c15_i32 : i32 to vector<32x512xi32>
    %5 = arith.andi %3, %4 : vector<32x512xi32>
    %c4_i32 = arith.constant 4 : i32
    %6 = vector.broadcast %c4_i32 : i32 to vector<32x512xi32>
    %7 = arith.shrsi %3, %6 : vector<32x512xi32>
    %c15_i32_1 = arith.constant 15 : i32
    %8 = vector.broadcast %c15_i32_1 : i32 to vector<32x512xi32>
    %9 = arith.andi %7, %8 : vector<32x512xi32>
    %c0_i32_2 = arith.constant 0 : i32
    %10 = vector.broadcast %c0_i32_2 : i32 to vector<32x512xi32>
    %11 = arith.cmpi sgt, %5, %10 : vector<32x512xi32>
    %c15_i32_3 = arith.constant 15 : i32
    %12 = vector.broadcast %c15_i32_3 : i32 to vector<32x512xi32>
    %13 = arith.cmpi slt, %5, %12 : vector<32x512xi32>
    %c0_i32_4 = arith.constant 0 : i32
    %14 = vector.broadcast %c0_i32_4 : i32 to vector<32x512xi32>
    %15 = arith.cmpi sgt, %9, %14 : vector<32x512xi32>
    %c15_i32_5 = arith.constant 15 : i32
    %16 = vector.broadcast %c15_i32_5 : i32 to vector<32x512xi32>
    %17 = arith.cmpi slt, %9, %16 : vector<32x512xi32>
    %18 = arith.andi %15, %11 : vector<32x512xi1>
    %19 = arith.andi %15, %13 : vector<32x512xi1>
    %20 = arith.andi %17, %11 : vector<32x512xi1>
    %21 = arith.andi %17, %13 : vector<32x512xi1>
    %c0 = arith.constant 0 : index
    %c0_6 = arith.constant 0 : index
    %c0_7 = arith.constant 0 : index
    %22 = vector.load %arg1[%c0, %c0_6, %c0_7] : memref<2x32x256xf32, #tpu.memory_space<vmem>>, vector<1x32x256xf32>
    %23 = vector.shape_cast %22 : vector<1x32x256xf32> to vector<32x256xf32>
    %24 = arith.truncf %23 : vector<32x256xf32> to vector<32x256xbf16>
    %c0_8 = arith.constant 0 : index
    %c128 = arith.constant 128 : index
    %25 = vector.load %arg10[%c0_8, %c128] : memref<32x768xbf16, #tpu.memory_space<vmem>>, vector<32x256xbf16>
    tpu.vector_store %arg10[%c0_8, %c128], %24 {strides = array<i32>} : memref<32x768xbf16, #tpu.memory_space<vmem>>, vector<32x256xbf16>,
    %c1 = arith.constant 1 : index
    %c0_9 = arith.constant 0 : index
    %c0_10 = arith.constant 0 : index
    %26 = vector.load %arg1[%c1, %c0_9, %c0_10] : memref<2x32x256xf32, #tpu.memory_space<vmem>>, vector<1x32x256xf32>
    %27 = vector.shape_cast %26 : vector<1x32x256xf32> to vector<32x256xf32>
    %28 = arith.truncf %27 : vector<32x256xf32> to vector<32x256xbf16>
    %c0_11 = arith.constant 0 : index
    %c384 = arith.constant 384 : index
    %29 = vector.load %arg10[%c0_11, %c384] : memref<32x768xbf16, #tpu.memory_space<vmem>>, vector<32x256xbf16>
    tpu.vector_store %arg10[%c0_11, %c384], %28 {strides = array<i32>} : memref<32x768xbf16, #tpu.memory_space<vmem>>, vector<32x256xbf16>,
    %c0_12 = arith.constant 0 : index
    %c0_13 = arith.constant 0 : index
    %30 = vector.load %arg10[%c0_12, %c0_13] : memref<32x768xbf16, #tpu.memory_space<vmem>>, vector<32x768xbf16>
    %31 = vector.extract_strided_slice %30 {offsets = [0, 111], sizes = [32, 512], strides = [1, 1]} : vector<32x768xbf16> to vector<32x512xbf16>
    %c0_i32_14 = arith.constant 0 : i32
    %32 = arith.sitofp %c0_i32_14 : i32 to bf16
    %33 = vector.broadcast %32 : bf16 to vector<32x512xbf16>
    %34 = arith.select %18, %31, %33 : vector<32x512xi1>, vector<32x512xbf16>
    %35 = vector.extract_strided_slice %30 {offsets = [0, 112], sizes = [32, 512], strides = [1, 1]} : vector<32x768xbf16> to vector<32x512xbf16>
    %c0_i32_15 = arith.constant 0 : i32
    %36 = arith.sitofp %c0_i32_15 : i32 to bf16
    %37 = vector.broadcast %36 : bf16 to vector<32x512xbf16>
    %38 = arith.select %15, %35, %37 : vector<32x512xi1>, vector<32x512xbf16>
    %39 = vector.extract_strided_slice %30 {offsets = [0, 113], sizes = [32, 512], strides = [1, 1]} : vector<32x768xbf16> to vector<32x512xbf16>
    %c0_i32_16 = arith.constant 0 : i32
    %40 = arith.sitofp %c0_i32_16 : i32 to bf16
    %41 = vector.broadcast %40 : bf16 to vector<32x512xbf16>
    %42 = arith.select %19, %39, %41 : vector<32x512xi1>, vector<32x512xbf16>
    %43 = vector.extract_strided_slice %30 {offsets = [0, 127], sizes = [32, 512], strides = [1, 1]} : vector<32x768xbf16> to vector<32x512xbf16>
    %c0_i32_17 = arith.constant 0 : i32
    %44 = arith.sitofp %c0_i32_17 : i32 to bf16
    %45 = vector.broadcast %44 : bf16 to vector<32x512xbf16>
    %46 = arith.select %11, %43, %45 : vector<32x512xi1>, vector<32x512xbf16>
    %47 = vector.extract_strided_slice %30 {offsets = [0, 128], sizes = [32, 512], strides = [1, 1]} : vector<32x768xbf16> to vector<32x512xbf16>
    %48 = vector.extract_strided_slice %30 {offsets = [0, 129], sizes = [32, 512], strides = [1, 1]} : vector<32x768xbf16> to vector<32x512xbf16>
    %c0_i32_18 = arith.constant 0 : i32
    %49 = arith.sitofp %c0_i32_18 : i32 to bf16
    %50 = vector.broadcast %49 : bf16 to vector<32x512xbf16>
    %51 = arith.select %13, %48, %50 : vector<32x512xi1>, vector<32x512xbf16>
    %52 = vector.extract_strided_slice %30 {offsets = [0, 143], sizes = [32, 512], strides = [1, 1]} : vector<32x768xbf16> to vector<32x512xbf16>
    %c0_i32_19 = arith.constant 0 : i32
    %53 = arith.sitofp %c0_i32_19 : i32 to bf16
    %54 = vector.broadcast %53 : bf16 to vector<32x512xbf16>
    %55 = arith.select %20, %52, %54 : vector<32x512xi1>, vector<32x512xbf16>
    %56 = vector.extract_strided_slice %30 {offsets = [0, 144], sizes = [32, 512], strides = [1, 1]} : vector<32x768xbf16> to vector<32x512xbf16>
    %c0_i32_20 = arith.constant 0 : i32
    %57 = arith.sitofp %c0_i32_20 : i32 to bf16
    %58 = vector.broadcast %57 : bf16 to vector<32x512xbf16>
    %59 = arith.select %17, %56, %58 : vector<32x512xi1>, vector<32x512xbf16>
    %60 = vector.extract_strided_slice %30 {offsets = [0, 145], sizes = [32, 512], strides = [1, 1]} : vector<32x768xbf16> to vector<32x512xbf16>
    %c0_i32_21 = arith.constant 0 : i32
    %61 = arith.sitofp %c0_i32_21 : i32 to bf16
    %62 = vector.broadcast %61 : bf16 to vector<32x512xbf16>
    %63 = arith.select %21, %60, %62 : vector<32x512xi1>, vector<32x512xbf16>
    %64 = tpu.concatenate %34, %38, %42, %46, %47, %51, %55, %59, %63 in 0 : vector<32x512xbf16>, vector<32x512xbf16>, vector<32x512xbf16>, vector<32x512xbf16>, vector<32x512xbf16>, vector<32x512xbf16>, vector<32x512xbf16>, vector<32x512xbf16>, vector<32x512xbf16> -> vector<288x512xbf16>
    %c0_22 = arith.constant 0 : index
    %c0_23 = arith.constant 0 : index
    %65 = vector.load %arg2[%c0_22, %c0_23] : memref<32x288xbf16, #tpu.memory_space<vmem>>, vector<32x288xbf16>
    %cst = arith.constant dense<0.000000e+00> : vector<32x512xf32>
    %66 = tpu.matmul %65, %64, %cst {dimension_numbers = #tpu.dot_dimension_numbers<[1], [0], [0], [1], [0, 0, 1, 1], [], []>} : vector<32x288xbf16>, vector<288x512xbf16>, vector<32x512xf32> -> vector<32x512xf32>
    %c0_24 = arith.constant 0 : index
    %c0_25 = arith.constant 0 : index
    %67 = vector.load %arg4[%c0_24, %c0_25] : memref<32x1xf32, #tpu.memory_space<vmem>>, vector<32x1xf32>
    %68 = vector.broadcast %67 : vector<32x1xf32> to vector<32x512xf32>
    %69 = arith.mulf %66, %68 : vector<32x512xf32>
    %c0_26 = arith.constant 0 : index
    %c0_27 = arith.constant 0 : index
    %70 = vector.load %arg5[%c0_26, %c0_27] : memref<32x1xf32, #tpu.memory_space<vmem>>, vector<32x1xf32>
    %71 = vector.broadcast %70 : vector<32x1xf32> to vector<32x512xf32>
    %72 = arith.addf %69, %71 : vector<32x512xf32>
    %cst_28 = arith.constant 0.000000e+00 : f32
    %73 = vector.broadcast %cst_28 : f32 to vector<32x512xf32>
    %74 = arith.maximumf %72, %73 : vector<32x512xf32>
    %cst_29 = arith.constant 0.000000e+00 : f32
    %75 = vector.broadcast %cst_29 : f32 to vector<32x512xf32>
    %76 = arith.cmpf oeq, %74, %75 : vector<32x512xf32>
    %cst_30 = arith.constant 1.000000e+00 : f32
    %cst_31 = arith.constant 0.000000e+00 : f32
    %77 = vector.broadcast %cst_30 : f32 to vector<32x512xf32>
    %78 = vector.broadcast %cst_31 : f32 to vector<32x512xf32>
    %79 = arith.select %76, %77, %78 : vector<32x512xi1>, vector<32x512xf32>
    %80 = vector.shape_cast %79 : vector<32x512xf32> to vector<1x32x512xf32>
    %cst_32 = arith.constant dense<0.000000e+00> : vector<1xf32>
    %81 = vector.multi_reduction <add>, %80, %cst_32 [1, 2] : vector<1x32x512xf32> to vector<1xf32>
    %82 = vector.shape_cast %81 : vector<1xf32> to vector<1x1x1xf32>
    %83 = vector.extract %82[0, 0, 0] : f32 from vector<1x1x1xf32>
    %84 = arith.truncf %74 : vector<32x512xf32> to vector<32x512xbf16>
    %c0_33 = arith.constant 0 : index
    %c128_34 = arith.constant 128 : index
    %85 = vector.load %arg10[%c0_33, %c128_34] : memref<32x768xbf16, #tpu.memory_space<vmem>>, vector<32x512xbf16>
    tpu.vector_store %arg10[%c0_33, %c128_34], %84 {strides = array<i32>} : memref<32x768xbf16, #tpu.memory_space<vmem>>, vector<32x512xbf16>,
    %c0_35 = arith.constant 0 : index
    %c0_36 = arith.constant 0 : index
    %86 = vector.load %arg10[%c0_35, %c0_36] : memref<32x768xbf16, #tpu.memory_space<vmem>>, vector<32x768xbf16>
    %87 = vector.extract_strided_slice %86 {offsets = [0, 111], sizes = [32, 512], strides = [1, 1]} : vector<32x768xbf16> to vector<32x512xbf16>
    %c0_i32_37 = arith.constant 0 : i32
    %88 = arith.sitofp %c0_i32_37 : i32 to bf16
    %89 = vector.broadcast %88 : bf16 to vector<32x512xbf16>
    %90 = arith.select %18, %87, %89 : vector<32x512xi1>, vector<32x512xbf16>
    %91 = vector.extract_strided_slice %86 {offsets = [0, 112], sizes = [32, 512], strides = [1, 1]} : vector<32x768xbf16> to vector<32x512xbf16>
    %c0_i32_38 = arith.constant 0 : i32
    %92 = arith.sitofp %c0_i32_38 : i32 to bf16
    %93 = vector.broadcast %92 : bf16 to vector<32x512xbf16>
    %94 = arith.select %15, %91, %93 : vector<32x512xi1>, vector<32x512xbf16>
    %95 = vector.extract_strided_slice %86 {offsets = [0, 113], sizes = [32, 512], strides = [1, 1]} : vector<32x768xbf16> to vector<32x512xbf16>
    %c0_i32_39 = arith.constant 0 : i32
    %96 = arith.sitofp %c0_i32_39 : i32 to bf16
    %97 = vector.broadcast %96 : bf16 to vector<32x512xbf16>
    %98 = arith.select %19, %95, %97 : vector<32x512xi1>, vector<32x512xbf16>
    %99 = vector.extract_strided_slice %86 {offsets = [0, 127], sizes = [32, 512], strides = [1, 1]} : vector<32x768xbf16> to vector<32x512xbf16>
    %c0_i32_40 = arith.constant 0 : i32
    %100 = arith.sitofp %c0_i32_40 : i32 to bf16
    %101 = vector.broadcast %100 : bf16 to vector<32x512xbf16>
    %102 = arith.select %11, %99, %101 : vector<32x512xi1>, vector<32x512xbf16>
    %103 = vector.extract_strided_slice %86 {offsets = [0, 128], sizes = [32, 512], strides = [1, 1]} : vector<32x768xbf16> to vector<32x512xbf16>
    %104 = vector.extract_strided_slice %86 {offsets = [0, 129], sizes = [32, 512], strides = [1, 1]} : vector<32x768xbf16> to vector<32x512xbf16>
    %c0_i32_41 = arith.constant 0 : i32
    %105 = arith.sitofp %c0_i32_41 : i32 to bf16
    %106 = vector.broadcast %105 : bf16 to vector<32x512xbf16>
    %107 = arith.select %13, %104, %106 : vector<32x512xi1>, vector<32x512xbf16>
    %108 = vector.extract_strided_slice %86 {offsets = [0, 143], sizes = [32, 512], strides = [1, 1]} : vector<32x768xbf16> to vector<32x512xbf16>
    %c0_i32_42 = arith.constant 0 : i32
    %109 = arith.sitofp %c0_i32_42 : i32 to bf16
    %110 = vector.broadcast %109 : bf16 to vector<32x512xbf16>
    %111 = arith.select %20, %108, %110 : vector<32x512xi1>, vector<32x512xbf16>
    %112 = vector.extract_strided_slice %86 {offsets = [0, 144], sizes = [32, 512], strides = [1, 1]} : vector<32x768xbf16> to vector<32x512xbf16>
    %c0_i32_43 = arith.constant 0 : i32
    %113 = arith.sitofp %c0_i32_43 : i32 to bf16
    %114 = vector.broadcast %113 : bf16 to vector<32x512xbf16>
    %115 = arith.select %17, %112, %114 : vector<32x512xi1>, vector<32x512xbf16>
    %116 = vector.extract_strided_slice %86 {offsets = [0, 145], sizes = [32, 512], strides = [1, 1]} : vector<32x768xbf16> to vector<32x512xbf16>
    %c0_i32_44 = arith.constant 0 : i32
    %117 = arith.sitofp %c0_i32_44 : i32 to bf16
    %118 = vector.broadcast %117 : bf16 to vector<32x512xbf16>
    %119 = arith.select %21, %116, %118 : vector<32x512xi1>, vector<32x512xbf16>
    %120 = tpu.concatenate %90, %94, %98, %102, %103, %107, %111, %115, %119 in 0 : vector<32x512xbf16>, vector<32x512xbf16>, vector<32x512xbf16>, vector<32x512xbf16>, vector<32x512xbf16>, vector<32x512xbf16>, vector<32x512xbf16>, vector<32x512xbf16>, vector<32x512xbf16> -> vector<288x512xbf16>
    %c0_45 = arith.constant 0 : index
    %c0_46 = arith.constant 0 : index
    %121 = vector.load %arg3[%c0_45, %c0_46] : memref<32x288xbf16, #tpu.memory_space<vmem>>, vector<32x288xbf16>
    %cst_47 = arith.constant dense<0.000000e+00> : vector<32x512xf32>
    %122 = tpu.matmul %121, %120, %cst_47 {dimension_numbers = #tpu.dot_dimension_numbers<[1], [0], [0], [1], [0, 0, 1, 1], [], []>} : vector<32x288xbf16>, vector<288x512xbf16>, vector<32x512xf32> -> vector<32x512xf32>
    %c0_48 = arith.constant 0 : index
    %c0_49 = arith.constant 0 : index
    %123 = vector.load %arg6[%c0_48, %c0_49] : memref<32x1xf32, #tpu.memory_space<vmem>>, vector<32x1xf32>
    %124 = vector.broadcast %123 : vector<32x1xf32> to vector<32x512xf32>
    %125 = arith.mulf %122, %124 : vector<32x512xf32>
    %c0_50 = arith.constant 0 : index
    %c0_51 = arith.constant 0 : index
    %126 = vector.load %arg7[%c0_50, %c0_51] : memref<32x1xf32, #tpu.memory_space<vmem>>, vector<32x1xf32>
    %127 = vector.broadcast %126 : vector<32x1xf32> to vector<32x512xf32>
    %128 = arith.addf %125, %127 : vector<32x512xf32>
    %129 = vector.extract_strided_slice %128 {offsets = [0, 0], sizes = [32, 256], strides = [1, 1]} : vector<32x512xf32> to vector<32x256xf32>
    %c0_52 = arith.constant 0 : index
    %c0_53 = arith.constant 0 : index
    %c0_54 = arith.constant 0 : index
    %130 = vector.load %arg1[%c0_52, %c0_53, %c0_54] : memref<2x32x256xf32, #tpu.memory_space<vmem>>, vector<1x32x256xf32>
    %131 = vector.shape_cast %130 : vector<1x32x256xf32> to vector<32x256xf32>
    %132 = arith.addf %129, %131 : vector<32x256xf32>
    %cst_55 = arith.constant 0.000000e+00 : f32
    %133 = vector.broadcast %cst_55 : f32 to vector<32x256xf32>
    %134 = arith.maximumf %132, %133 : vector<32x256xf32>
    %c0_56 = arith.constant 0 : index
    %c0_57 = arith.constant 0 : index
    %c0_58 = arith.constant 0 : index
    %135 = vector.load %arg8[%c0_56, %c0_57, %c0_58] : memref<2x32x256xf32, #tpu.memory_space<vmem>>, vector<1x32x256xf32>
    %136 = vector.shape_cast %135 : vector<1x32x256xf32> to vector<32x256xf32>
    %137 = vector.shape_cast %134 : vector<32x256xf32> to vector<1x32x256xf32>
    tpu.vector_store %arg8[%c0_56, %c0_57, %c0_58], %137 {strides = array<i32>} : memref<2x32x256xf32, #tpu.memory_space<vmem>>, vector<1x32x256xf32>,
    %cst_59 = arith.constant 0.000000e+00 : f32
    %138 = vector.broadcast %cst_59 : f32 to vector<32x256xf32>
    %139 = arith.cmpf oeq, %134, %138 : vector<32x256xf32>
    %cst_60 = arith.constant 1.000000e+00 : f32
    %cst_61 = arith.constant 0.000000e+00 : f32
    %140 = vector.broadcast %cst_60 : f32 to vector<32x256xf32>
    %141 = vector.broadcast %cst_61 : f32 to vector<32x256xf32>
    %142 = arith.select %139, %140, %141 : vector<32x256xi1>, vector<32x256xf32>
    %143 = vector.shape_cast %142 : vector<32x256xf32> to vector<1x32x256xf32>
    %cst_62 = arith.constant dense<0.000000e+00> : vector<1xf32>
    %144 = vector.multi_reduction <add>, %143, %cst_62 [1, 2] : vector<1x32x256xf32> to vector<1xf32>
    %145 = vector.shape_cast %144 : vector<1xf32> to vector<1x1x1xf32>
    %146 = vector.extract %145[0, 0, 0] : f32 from vector<1x1x1xf32>
    %cst_63 = arith.constant 0.000000e+00 : f32
    %147 = arith.addf %cst_63, %146 : f32
    %148 = vector.extract_strided_slice %128 {offsets = [0, 256], sizes = [32, 256], strides = [1, 1]} : vector<32x512xf32> to vector<32x256xf32>
    %c1_64 = arith.constant 1 : index
    %c0_65 = arith.constant 0 : index
    %c0_66 = arith.constant 0 : index
    %149 = vector.load %arg1[%c1_64, %c0_65, %c0_66] : memref<2x32x256xf32, #tpu.memory_space<vmem>>, vector<1x32x256xf32>
    %150 = vector.shape_cast %149 : vector<1x32x256xf32> to vector<32x256xf32>
    %151 = arith.addf %148, %150 : vector<32x256xf32>
    %cst_67 = arith.constant 0.000000e+00 : f32
    %152 = vector.broadcast %cst_67 : f32 to vector<32x256xf32>
    %153 = arith.maximumf %151, %152 : vector<32x256xf32>
    %c1_68 = arith.constant 1 : index
    %c0_69 = arith.constant 0 : index
    %c0_70 = arith.constant 0 : index
    %154 = vector.load %arg8[%c1_68, %c0_69, %c0_70] : memref<2x32x256xf32, #tpu.memory_space<vmem>>, vector<1x32x256xf32>
    %155 = vector.shape_cast %154 : vector<1x32x256xf32> to vector<32x256xf32>
    %156 = vector.shape_cast %153 : vector<32x256xf32> to vector<1x32x256xf32>
    tpu.vector_store %arg8[%c1_68, %c0_69, %c0_70], %156 {strides = array<i32>} : memref<2x32x256xf32, #tpu.memory_space<vmem>>, vector<1x32x256xf32>,
    %cst_71 = arith.constant 0.000000e+00 : f32
    %157 = vector.broadcast %cst_71 : f32 to vector<32x256xf32>
    %158 = arith.cmpf oeq, %153, %157 : vector<32x256xf32>
    %cst_72 = arith.constant 1.000000e+00 : f32
    %cst_73 = arith.constant 0.000000e+00 : f32
    %159 = vector.broadcast %cst_72 : f32 to vector<32x256xf32>
    %160 = vector.broadcast %cst_73 : f32 to vector<32x256xf32>
    %161 = arith.select %158, %159, %160 : vector<32x256xi1>, vector<32x256xf32>
    %162 = vector.shape_cast %161 : vector<32x256xf32> to vector<1x32x256xf32>
    %cst_74 = arith.constant dense<0.000000e+00> : vector<1xf32>
    %163 = vector.multi_reduction <add>, %162, %cst_74 [1, 2] : vector<1x32x256xf32> to vector<1xf32>
    %164 = vector.shape_cast %163 : vector<1xf32> to vector<1x1x1xf32>
    %165 = vector.extract %164[0, 0, 0] : f32 from vector<1x1x1xf32>
    %166 = arith.addf %147, %165 : f32
    %167 = arith.fptosi %83 : f32 to i32
    %c0_75 = arith.constant 0 : index
    %c0_76 = arith.constant 0 : index
    %168 = memref.load %arg9[%c0_75, %c0_76] : memref<1x2xi32, #tpu.memory_space<smem>>
    memref.store %167, %arg9[%c0_75, %c0_76] : memref<1x2xi32, #tpu.memory_space<smem>>
    %169 = arith.fptosi %166 : f32 to i32
    %c0_77 = arith.constant 0 : index
    %c1_78 = arith.constant 1 : index
    %170 = memref.load %arg9[%c0_77, %c1_78] : memref<1x2xi32, #tpu.memory_space<smem>>
    memref.store %169, %arg9[%c0_77, %c1_78] : memref<1x2xi32, #tpu.memory_space<smem>>
    return
  }
  func.func @transform_0(%arg0: i32) -> (i32, i32, i32) {
    %c0_i32 = arith.constant 0 : i32
    %c0_i32_0 = arith.constant 0 : i32
    %c0_i32_1 = arith.constant 0 : i32
    return %arg0, %c0_i32, %c0_i32_0 : i32, i32, i32
  }
  func.func @transform_1(%arg0: i32) -> (i32, i32) {
    %c0_i32 = arith.constant 0 : i32
    %c0_i32_0 = arith.constant 0 : i32
    %c0_i32_1 = arith.constant 0 : i32
    return %c0_i32, %c0_i32_0 : i32, i32
  }
  func.func @transform_2(%arg0: i32) -> (i32, i32) {
    %c0_i32 = arith.constant 0 : i32
    %c0_i32_0 = arith.constant 0 : i32
    %c0_i32_1 = arith.constant 0 : i32
    return %c0_i32, %c0_i32_0 : i32, i32
  }
  func.func @transform_3(%arg0: i32) -> (i32, i32) {
    %c0_i32 = arith.constant 0 : i32
    %c0_i32_0 = arith.constant 0 : i32
    %c0_i32_1 = arith.constant 0 : i32
    return %c0_i32, %c0_i32_0 : i32, i32
  }
  func.func @transform_4(%arg0: i32) -> (i32, i32) {
    %c0_i32 = arith.constant 0 : i32
    %c0_i32_0 = arith.constant 0 : i32
    %c0_i32_1 = arith.constant 0 : i32
    return %c0_i32, %c0_i32_0 : i32, i32
  }
  func.func @transform_5(%arg0: i32) -> (i32, i32) {
    %c0_i32 = arith.constant 0 : i32
    %c0_i32_0 = arith.constant 0 : i32
    %c0_i32_1 = arith.constant 0 : i32
    return %c0_i32, %c0_i32_0 : i32, i32
  }
  func.func @transform_6(%arg0: i32) -> (i32, i32) {
    %c0_i32 = arith.constant 0 : i32
    %c0_i32_0 = arith.constant 0 : i32
    %c0_i32_1 = arith.constant 0 : i32
    return %c0_i32, %c0_i32_0 : i32, i32
  }
  func.func @transform_7(%arg0: i32) -> (i32, i32, i32) {
    %c0_i32 = arith.constant 0 : i32
    %c0_i32_0 = arith.constant 0 : i32
    %c0_i32_1 = arith.constant 0 : i32
    return %arg0, %c0_i32, %c0_i32_0 : i32, i32, i32
  }
  func.func @transform_8(%arg0: i32) -> (i32, i32) {
    %c0_i32 = arith.constant 0 : i32
    %c0_i32_0 = arith.constant 0 : i32
    return %arg0, %c0_i32 : i32, i32
  }
}

</mosaic_0001>

<llo_original>
// kernel: tpu_custom_call.1
$region0: #{tpu_custom_call.1}
  #allocation0 [shape = 'u32[]', space=smem, size = 0x4, offset = 0x4, fixed_abs, tag = 'smem constant byte address 0x4 - core index']
  #allocation1 [shape = 'u32[144,128]{1,0:T(1,128)}', space=vmem, size = 0x12000, scoped, tag = 'internal scratch']
  #allocation2 [shape = 'bf16[32,768]{1,0:T(16,128)(2,1)}', space=vmem, size = 0xc000, scoped, tag = 'scratch operand']
  %s0 = inlined_call_operand.vmem [shape: f32[2,32,256], index: 0, kind: input, shape index: {}]
  %s1 = inlined_call_operand.hbm [shape: bf16[32,288], index: 1, kind: input, shape index: {}]
  %s2 = inlined_call_operand.hbm [shape: bf16[32,288], index: 2, kind: input, shape index: {}]
  %s3 = inlined_call_operand.vmem [shape: f32[32,1], index: 3, kind: input, shape index: {}]
  %s4 = inlined_call_operand.vmem [shape: f32[32,1], index: 4, kind: input, shape index: {}]
  %s5 = inlined_call_operand.vmem [shape: f32[32,1], index: 5, kind: input, shape index: {}]
  %s6 = inlined_call_operand.vmem [shape: f32[32,1], index: 6, kind: input, shape index: {}]
  %s7 = inlined_call_operand.hbm [shape: f32[2,32,256], index: 7, kind: output, shape index: {0}]
  %s8 = inlined_call_operand.hbm [shape: s32[1,2], index: 8, kind: output, shape index: {1}]
  %9 = xla_tuple %s7, %s8
  %s10 = sld [smem:[#allocation0]]
  $region58: #{tpu_custom_call.1} parent=0
    _
  %s12 = ssub.s32 1, %s10
  %s13 = scalar_select 0, %s12, %s10
  $region1: #{tpu_custom_call.1} parent=0
    #allocation3 [shape = 'u8[24576]{0}', space=vmem, size = 0x6000, scoped, tag = 'input window, operand 1, single buffered']
    #allocation4 [shape = 's32[1]{0}', space=sflag, size = 0x4, scoped, tag = 'scoped memory for tpu_custom_call.1']
    #allocation5 [shape = 's32[1]{0}', space=sflag, size = 0x4, scoped, tag = 'scoped memory for tpu_custom_call.1']
    #allocation6 [shape = 's32[1]{0}', space=sflag, size = 0x4, scoped, tag = 'scoped memory for tpu_custom_call.1']
    #allocation7 [shape = 'u8[24576]{0}', space=vmem, size = 0x6000, scoped, tag = 'input window, operand 2, single buffered']
    #allocation8 [shape = 's32[1]{0}', space=sflag, size = 0x4, scoped, tag = 'scoped memory for tpu_custom_call.1']
    #allocation9 [shape = 'u8[65536]{0}', space=vmem, size = 0x10000, scoped, tag = 'output window, operand 0, single buffered']
    #allocation10 [shape = 'u8[512]{0}', space=smem, size = 0x200, scoped, tag = 'output window, operand 1, single buffered']
    %14 = vsyncpa [#allocation4], 0
    %15 = vsyncpa [#allocation8], 0
    %16 = vsyncpa [#allocation5], 0
    %17 = vsyncpa [#allocation6], 0
    // Predicated region
    $region2: #{tpu_custom_call.1} parent=1 // pred_check
      _
    $region3: #{tpu_custom_call.1} parent=1 // pred_check_branch
      %19 = sbr.rel (0) target = $region5
    $region4: #{tpu_custom_call.1} parent=1 // pred_region
      _
    $region5: #{tpu_custom_call.1} parent=1 // pred_fallthru
      _
    // Predicated region
    $region6: #{tpu_custom_call.1} parent=1 // pred_check
      _
    $region7: #{tpu_custom_call.1} parent=1 // pred_check_branch
      %21 = sbr.rel (0) target = $region9
    $region8: #{tpu_custom_call.1} parent=1 // pred_region
      %s23 = ssub.s32 768, 768
      %24 = vsyncadd [#allocation4], %s23
      %s25 = sshll.u32 [#allocation3], 4
      %s26 = int_to_ptr.vmem [resolvable:$true] %s25
      %31 = dma.hbm_to_vmem [thread:$0]  %s1, 768, %s26, [#allocation4], 192, 192, 12
    $region9: #{tpu_custom_call.1} parent=1 // pred_fallthru
      _
    // Predicated region
    $region10: #{tpu_custom_call.1} parent=1 // pred_check
      _
    $region11: #{tpu_custom_call.1} parent=1 // pred_check_branch
      %33 = sbr.rel (0) target = $region13
    $region12: #{tpu_custom_call.1} parent=1 // pred_region
      %s35 = ssub.s32 768, 768
      %36 = vsyncadd [#allocation8], %s35
      %s37 = sshll.u32 [#allocation7], 4
      %s38 = int_to_ptr.vmem [resolvable:$true] %s37
      %43 = dma.hbm_to_vmem [thread:$0]  %s2, 768, %s38, [#allocation8], 192, 192, 12
    $region13: #{tpu_custom_call.1} parent=1 // pred_fallthru
      _
    // Predicated region
    $region14: #{tpu_custom_call.1} parent=1 // pred_check
      _
    $region15: #{tpu_custom_call.1} parent=1 // pred_check_branch
      %45 = sbr.rel (0) target = $region17
    $region16: #{tpu_custom_call.1} parent=1 // pred_region
      _
    $region17: #{tpu_custom_call.1} parent=1 // pred_fallthru
      _
    // Predicated region
    $region18: #{tpu_custom_call.1} parent=1 // pred_check
      _
    $region19: #{tpu_custom_call.1} parent=1 // pred_check_branch
      %47 = sbr.rel (0) target = $region21
    $region20: #{tpu_custom_call.1} parent=1 // pred_region
      _
    $region21: #{tpu_custom_call.1} parent=1 // pred_fallthru
      _
    // Predicated region
    $region22: #{tpu_custom_call.1} parent=1 // pred_check
      _
    $region23: #{tpu_custom_call.1} parent=1 // pred_check_branch
      %49 = sbr.rel (0) target = $region25
    $region24: #{tpu_custom_call.1} parent=1 // pred_region
      _
    $region25: #{tpu_custom_call.1} parent=1 // pred_fallthru
      _
    // Predicated region
    $region26: #{tpu_custom_call.1} parent=1 // pred_check
      _
    $region27: #{tpu_custom_call.1} parent=1 // pred_check_branch
      %51 = sbr.rel (0) target = $region29
    $region28: #{tpu_custom_call.1} parent=1 // pred_region
      _
    $region29: #{tpu_custom_call.1} parent=1 // pred_fallthru
      _
    // Predicated region
    $region30: #{tpu_custom_call.1} parent=1 // pred_check
      _
    $region31: #{tpu_custom_call.1} parent=1 // pred_check_branch
      %53 = sbr.rel (0) target = $region33
    $region32: #{tpu_custom_call.1} parent=1 // pred_region
      %54 = dma.done [#allocation4], 768
    $region33: #{tpu_custom_call.1} parent=1 // pred_fallthru
      _
    // Predicated region
    $region34: #{tpu_custom_call.1} parent=1 // pred_check
      _
    $region35: #{tpu_custom_call.1} parent=1 // pred_check_branch
      %56 = sbr.rel (0) target = $region37
    $region36: #{tpu_custom_call.1} parent=1 // pred_region
      %57 = dma.done [#allocation8], 768
    $region37: #{tpu_custom_call.1} parent=1 // pred_fallthru
      _
    %p61 = scmp.eq.s32.totalorder 0, 0
    // Predicated region
    $region38: #{tpu_custom_call.1} parent=1 // pred_check
      %p62 = pneg %p61
    $region39: #{tpu_custom_call.1} parent=1 // pred_check_branch
      %64 = sbr.rel (%p62) target = $region41
    $region40: #{tpu_custom_call.1} parent=1 // pred_region
      %65 = vst [vmem:[#allocation2] sm:$0xff] 0
      %66 = vst [vmem:[#allocation2 + $0x30] sm:$0xff] 0
      %67 = vst [vmem:[#allocation2 + $0x28] sm:$0xff] 0
      %68 = vst [vmem:[#allocation2 + $0x58] sm:$0xff] 0
    $region41: #{tpu_custom_call.1} parent=1 // pred_fallthru
      _
    %v69 = vlaneseq
    %v70 = vand.u32 %v69, 127
    %v71 = vadd.s32 %v70, 128
    %v72 = vadd.s32 %v70, 256
    %v73 = vadd.s32 %v70, 384
    %v74 = vand.u32 %v70, 15
    %v75 = vand.u32 %v71, 15
    %v76 = vand.u32 %v72, 15
    %v77 = vand.u32 %v73, 15
    %v78 = vshra.s32 %v70, 4
    %v79 = vshra.s32 %v71, 4
    %v80 = vshra.s32 %v72, 4
    %v81 = vshra.s32 %v73, 4
    %v82 = vand.u32 %v78, 15
    %v83 = vand.u32 %v79, 15
    %v84 = vand.u32 %v80, 15
    %v85 = vand.u32 %v81, 15
    %vm86 = vcmp.gt.s32.totalorder %v74, 0
    %vm87 = vcmp.gt.s32.totalorder %v75, 0
    %vm88 = vcmp.gt.s32.totalorder %v76, 0
    %vm89 = vcmp.gt.s32.totalorder %v77, 0
    %vm90 = vcmp.lt.s32.totalorder %v74, 15
    %vm91 = vcmp.lt.s32.totalorder %v75, 15
    %vm92 = vcmp.lt.s32.totalorder %v76, 15
    %vm93 = vcmp.lt.s32.totalorder %v77, 15
    %vm94 = vcmp.gt.s32.totalorder %v82, 0
    %vm95 = vcmp.gt.s32.totalorder %v83, 0
    %vm96 = vcmp.gt.s32.totalorder %v84, 0
    %vm97 = vcmp.gt.s32.totalorder %v85, 0
    %vm98 = vcmp.lt.s32.totalorder %v82, 15
    %vm99 = vcmp.lt.s32.totalorder %v83, 15
    %vm100 = vcmp.lt.s32.totalorder %v84, 15
    %vm101 = vcmp.lt.s32.totalorder %v85, 15
    %vm102 = vmand %vm94, %vm86
    %vm103 = vmand %vm95, %vm87
    %vm104 = vmand %vm96, %vm88
    %vm105 = vmand %vm97, %vm89
    %vm106 = vmand %vm94, %vm90
    %vm107 = vmand %vm95, %vm91
    %vm108 = vmand %vm96, %vm92
    %vm109 = vmand %vm97, %vm93
    %vm110 = vmand %vm98, %vm86
    %vm111 = vmand %vm99, %vm87
    %vm112 = vmand %vm100, %vm88
    %vm113 = vmand %vm101, %vm89
    %vm114 = vmand %vm98, %vm90
    %vm115 = vmand %vm99, %vm91
    %vm116 = vmand %vm100, %vm92
    %vm117 = vmand %vm101, %vm93
    %v118 = vld [vmem:[%s0] sm:$0xff]
    %v119 = vld [vmem:[%s0 + $0x8] sm:$0xff]
    %v120 = vld [vmem:[%s0 + $0x10] sm:$0xff]
    %v121 = vld [vmem:[%s0 + $0x18] sm:$0xff]
    %v122 = vld [vmem:[%s0 + $0x20] sm:$0xff]
    %v123 = vld [vmem:[%s0 + $0x28] sm:$0xff]
    %v124 = vld [vmem:[%s0 + $0x30] sm:$0xff]
    %v125 = vld [vmem:[%s0 + $0x38] sm:$0xff]
    %v126 = vpack.c.bf16 %v120, %v118
    %v127 = vpack.c.bf16 %v121, %v119
    %v128 = vpack.c.bf16 %v124, %v122
    %v129 = vpack.c.bf16 %v125, %v123
    %130 = vst [vmem:[#allocation2 + $0x8] sm:$0xff] %v126
    %131 = vst [vmem:[#allocation2 + $0x10] sm:$0xff] %v127
    %132 = vst [vmem:[#allocation2 + $0x38] sm:$0xff] %v128
    %133 = vst [vmem:[#allocation2 + $0x40] sm:$0xff] %v129
    %s134 = scalar_lea.vmem %s0, 64
    %v135 = vld [vmem:[%s134] sm:$0xff]
    %v136 = vld [vmem:[%s134 + $0x8] sm:$0xff]
    %v137 = vld [vmem:[%s134 + $0x10] sm:$0xff]
    %v138 = vld [vmem:[%s134 + $0x18] sm:$0xff]
    %v139 = vld [vmem:[%s134 + $0x20] sm:$0xff]
    %v140 = vld [vmem:[%s134 + $0x28] sm:$0xff]
    %v141 = vld [vmem:[%s134 + $0x30] sm:$0xff]
    %v142 = vld [vmem:[%s134 + $0x38] sm:$0xff]
    %v143 = vpack.c.bf16 %v137, %v135
    %v144 = vpack.c.bf16 %v138, %v136
    %v145 = vpack.c.bf16 %v141, %v139
    %v146 = vpack.c.bf16 %v142, %v140
    %147 = vst [vmem:[#allocation2 + $0x18] sm:$0xff] %v143
    %148 = vst [vmem:[#allocation2 + $0x20] sm:$0xff] %v144
    %149 = vst [vmem:[#allocation2 + $0x48] sm:$0xff] %v145
    %150 = vst [vmem:[#allocation2 + $0x50] sm:$0xff] %v146
    %v151 = vld [vmem:[#allocation2] sm:$0xff]
    %v152 = vld [vmem:[#allocation2 + $0x8] sm:$0xff]
    %v153 = vld [vmem:[#allocation2 + $0x10] sm:$0xff]
    %v154 = vld [vmem:[#allocation2 + $0x18] sm:$0xff]
    %v155 = vld [vmem:[#allocation2 + $0x20] sm:$0xff]
    %v156 = vld [vmem:[#allocation2 + $0x28] sm:$0xff]
    %v157 = vld [vmem:[#allocation2 + $0x30] sm:$0xff]
    %v158 = vld [vmem:[#allocation2 + $0x38] sm:$0xff]
    %v159 = vld [vmem:[#allocation2 + $0x40] sm:$0xff]
    %v160 = vld [vmem:[#allocation2 + $0x48] sm:$0xff]
    %v161 = vld [vmem:[#allocation2 + $0x50] sm:$0xff]
    %v162 = vld [vmem:[#allocation2 + $0x58] sm:$0xff]
    %vm163 = vmpackc.low %vm103, %vm102
    %vm164 = vmpackc.low %vm105, %vm104
    %v165 = vsel %vm163, 65537, 0
    %v166 = vsel %vm164, 65537, 0
    %v167 = vlaneseq
    %v168 = vshrl.u32 %v167, 7
    %v169 = vsub.s32 0, %v168
    %v170 = vrot.slane %v165, %v169
    %v171 = vlaneseq
    %v172 = vshrl.u32 %v171, 7
    %v173 = vsub.s32 4, %v172
    %v174 = vrot.slane %v165, %v173
    %v175 = vlaneseq
    %v176 = vshrl.u32 %v175, 7
    %v177 = vsub.s32 0, %v176
    %v178 = vrot.slane %v166, %v177
    %v179 = vlaneseq
    %v180 = vshrl.u32 %v179, 7
    %v181 = vsub.s32 4, %v180
    %v182 = vrot.slane %v166, %v181
    %183 = vrot.lane.b32.xlu0 %v170, 111
    %v184 = vpop.permute.xlu0 %183
    %185 = vrot.lane.b32.xlu0 %v174, 111
    %v186 = vpop.permute.xlu0 %185
    %187 = vrot.lane.b32.xlu0 %v178, 111
    %v188 = vpop.permute.xlu0 %187
    %189 = vrot.lane.b32.xlu0 %v182, 111
    %v190 = vpop.permute.xlu0 %189
    %vm191 = vcmask 908288
    %v192 = vsel %vm191, %v184, %v186
    %v193 = vsel %vm191, %v186, %v188
    %v194 = vsel %vm191, %v188, %v190
    %vm195 = vcmp.ne.s16.totalorder %v184, 0
    %vm196 = vcmp.ne.s16.totalorder %v192, 0
    %vm197 = vcmp.ne.s16.totalorder %v193, 0
    %vm198 = vcmp.ne.s16.totalorder %v194, 0
    %vm199 = vcmp.ne.s16.totalorder %v190, 0
    %v200 = vsel %vm195, %v151, 0
    %v201 = vsel %vm196, %v152, 0
    %v202 = vsel %vm197, %v153, 0
    %v203 = vsel %vm198, %v154, 0
    %v204 = vsel %vm199, %v155, 0
    %v205 = vsel %vm195, %v157, 0
    %v206 = vsel %vm196, %v158, 0
    %v207 = vsel %vm197, %v159, 0
    %v208 = vsel %vm198, %v160, 0
    %v209 = vsel %vm199, %v161, 0
    %vm210 = vmpackc.low %vm95, %vm94
    %vm211 = vmpackc.low %vm97, %vm96
    %v212 = vsel %vm210, 65537, 0
    %v213 = vsel %vm211, 65537, 0
    %v214 = vlaneseq
    %v215 = vshrl.u32 %v214, 7
    %v216 = vsub.s32 0, %v215
    %v217 = vrot.slane %v212, %v216
    %v218 = vlaneseq
    %v219 = vshrl.u32 %v218, 7
    %v220 = vsub.s32 4, %v219
    %v221 = vrot.slane %v212, %v220
    %v222 = vlaneseq
    %v223 = vshrl.u32 %v222, 7
    %v224 = vsub.s32 0, %v223
    %v225 = vrot.slane %v213, %v224
    %v226 = vlaneseq
    %v227 = vshrl.u32 %v226, 7
    %v228 = vsub.s32 4, %v227
    %v229 = vrot.slane %v213, %v228
    %230 = vrot.lane.b32.xlu0 %v217, 112
    %v231 = vpop.permute.xlu0 %230
    %232 = vrot.lane.b32.xlu0 %v221, 112
    %v233 = vpop.permute.xlu0 %232
    %234 = vrot.lane.b32.xlu0 %v225, 112
    %v235 = vpop.permute.xlu0 %234
    %236 = vrot.lane.b32.xlu0 %v229, 112
    %v237 = vpop.permute.xlu0 %236
    %vm238 = vcmask 916480
    %v239 = vsel %vm238, %v231, %v233
    %v240 = vsel %vm238, %v233, %v235
    %v241 = vsel %vm238, %v235, %v237
    %vm242 = vcmp.ne.s16.totalorder %v231, 0
    %vm243 = vcmp.ne.s16.totalorder %v239, 0
    %vm244 = vcmp.ne.s16.totalorder %v240, 0
    %vm245 = vcmp.ne.s16.totalorder %v241, 0
    %vm246 = vcmp.ne.s16.totalorder %v237, 0
    %v247 = vsel %vm242, %v151, 0
    %v248 = vsel %vm243, %v152, 0
    %v249 = vsel %vm244, %v153, 0
    %v250 = vsel %vm245, %v154, 0
    %v251 = vsel %vm246, %v155, 0
    %v252 = vsel %vm242, %v157, 0
    %v253 = vsel %vm243, %v158, 0
    %v254 = vsel %vm244, %v159, 0
    %v255 = vsel %vm245, %v160, 0
    %v256 = vsel %vm246, %v161, 0
    %vm257 = vmpackc.low %vm107, %vm106
    %vm258 = vmpackc.low %vm109, %vm108
    %v259 = vsel %vm257, 65537, 0
    %v260 = vsel %vm258, 65537, 0
    %v261 = vlaneseq
    %v262 = vshrl.u32 %v261, 7
    %v263 = vsub.s32 0, %v262
    %v264 = vrot.slane %v259, %v263
    %v265 = vlaneseq
    %v266 = vshrl.u32 %v265, 7
    %v267 = vsub.s32 4, %v266
    %v268 = vrot.slane %v259, %v267
    %v269 = vlaneseq
    %v270 = vshrl.u32 %v269, 7
    %v271 = vsub.s32 0, %v270
    %v272 = vrot.slane %v260, %v271
    %v273 = vlaneseq
    %v274 = vshrl.u32 %v273, 7
    %v275 = vsub.s32 4, %v274
    %v276 = vrot.slane %v260, %v275
    %277 = vrot.lane.b32.xlu0 %v264, 113
    %v278 = vpop.permute.xlu0 %277
    %279 = vrot.lane.b32.xlu0 %v268, 113
    %v280 = vpop.permute.xlu0 %279
    %281 = vrot.lane.b32.xlu0 %v272, 113
    %v282 = vpop.permute.xlu0 %281
    %283 = vrot.lane.b32.xlu0 %v276, 113
    %v284 = vpop.permute.xlu0 %283
    %vm285 = vcmask 924672
    %v286 = vsel %vm285, %v278, %v280
    %v287 = vsel %vm285, %v280, %v282
    %v288 = vsel %vm285, %v282, %v284
    %vm289 = vcmp.ne.s16.totalorder %v278, 0
    %vm290 = vcmp.ne.s16.totalorder %v286, 0
    %vm291 = vcmp.ne.s16.totalorder %v287, 0
    %vm292 = vcmp.ne.s16.totalorder %v288, 0
    %vm293 = vcmp.ne.s16.totalorder %v284, 0
    %v294 = vsel %vm289, %v151, 0
    %v295 = vsel %vm290, %v152, 0
    %v296 = vsel %vm291, %v153, 0
    %v297 = vsel %vm292, %v154, 0
    %v298 = vsel %vm293, %v155, 0
    %v299 = vsel %vm289, %v157, 0
    %v300 = vsel %vm290, %v158, 0
    %v301 = vsel %vm291, %v159, 0
    %v302 = vsel %vm292, %v160, 0
    %v303 = vsel %vm293, %v161, 0
    %vm304 = vmpackc.low %vm87, %vm86
    %vm305 = vmpackc.low %vm89, %vm88
    %v306 = vsel %vm304, 65537, 0
    %v307 = vsel %vm305, 65537, 0
    %v308 = vlaneseq
    %v309 = vshrl.u32 %v308, 7
    %v310 = vsub.s32 0, %v309
    %v311 = vrot.slane %v306, %v310
    %v312 = vlaneseq
    %v313 = vshrl.u32 %v312, 7
    %v314 = vsub.s32 4, %v313
    %v315 = vrot.slane %v306, %v314
    %v316 = vlaneseq
    %v317 = vshrl.u32 %v316, 7
    %v318 = vsub.s32 0, %v317
    %v319 = vrot.slane %v307, %v318
    %v320 = vlaneseq
    %v321 = vshrl.u32 %v320, 7
    %v322 = vsub.s32 4, %v321
    %v323 = vrot.slane %v307, %v322
    %324 = vrot.lane.b32.xlu0 %v311, 127
    %v325 = vpop.permute.xlu0 %324
    %326 = vrot.lane.b32.xlu0 %v315, 127
    %v327 = vpop.permute.xlu0 %326
    %328 = vrot.lane.b32.xlu0 %v319, 127
    %v329 = vpop.permute.xlu0 %328
    %330 = vrot.lane.b32.xlu0 %v323, 127
    %v331 = vpop.permute.xlu0 %330
    %vm332 = vcmask 1039360
    %v333 = vsel %vm332, %v325, %v327
    %v334 = vsel %vm332, %v327, %v329
    %v335 = vsel %vm332, %v329, %v331
    %vm336 = vcmp.ne.s16.totalorder %v325, 0
    %vm337 = vcmp.ne.s16.totalorder %v333, 0
    %vm338 = vcmp.ne.s16.totalorder %v334, 0
    %vm339 = vcmp.ne.s16.totalorder %v335, 0
    %vm340 = vcmp.ne.s16.totalorder %v331, 0
    %v341 = vsel %vm336, %v151, 0
    %v342 = vsel %vm337, %v152, 0
    %v343 = vsel %vm338, %v153, 0
    %v344 = vsel %vm339, %v154, 0
    %v345 = vsel %vm340, %v155, 0
    %v346 = vsel %vm336, %v157, 0
    %v347 = vsel %vm337, %v158, 0
    %v348 = vsel %vm338, %v159, 0
    %v349 = vsel %vm339, %v160, 0
    %v350 = vsel %vm340, %v161, 0
    %vm351 = vmpackc.low %vm91, %vm90
    %vm352 = vmpackc.low %vm93, %vm92
    %v353 = vsel %vm351, 65537, 0
    %v354 = vsel %vm352, 65537, 0
    %v355 = vlaneseq
    %v356 = vshrl.u32 %v355, 7
    %v357 = vsub.s32 0, %v356
    %v358 = vrot.slane %v353, %v357
    %v359 = vlaneseq
    %v360 = vshrl.u32 %v359, 7
    %v361 = vsub.s32 4, %v360
    %v362 = vrot.slane %v353, %v361
    %v363 = vlaneseq
    %v364 = vshrl.u32 %v363, 7
    %v365 = vsub.s32 0, %v364
    %v366 = vrot.slane %v354, %v365
    %v367 = vlaneseq
    %v368 = vshrl.u32 %v367, 7
    %v369 = vsub.s32 4, %v368
    %v370 = vrot.slane %v354, %v369
    %371 = vrot.lane.b32.xlu0 %v358, 1
    %v372 = vpop.permute.xlu0 %371
    %373 = vrot.lane.b32.xlu0 %v362, 1
    %v374 = vpop.permute.xlu0 %373
    %375 = vrot.lane.b32.xlu0 %v366, 1
    %v376 = vpop.permute.xlu0 %375
    %377 = vrot.lane.b32.xlu0 %v370, 1
    %v378 = vpop.permute.xlu0 %377
    %vm379 = vcmask 7168
    %v380 = vsel %vm379, %v372, %v374
    %v381 = vsel %vm379, %v374, %v376
    %v382 = vsel %vm379, %v376, %v378
    %vm383 = vcmp.ne.s16.totalorder %v372, 0
    %vm384 = vcmp.ne.s16.totalorder %v380, 0
    %vm385 = vcmp.ne.s16.totalorder %v381, 0
    %vm386 = vcmp.ne.s16.totalorder %v382, 0
    %vm387 = vcmp.ne.s16.totalorder %v378, 0
    %v388 = vsel %vm383, %v152, 0
    %v389 = vsel %vm384, %v153, 0
    %v390 = vsel %vm385, %v154, 0
    %v391 = vsel %vm386, %v155, 0
    %v392 = vsel %vm387, %v156, 0
    %v393 = vsel %vm383, %v158, 0
    %v394 = vsel %vm384, %v159, 0
    %v395 = vsel %vm385, %v160, 0
    %v396 = vsel %vm386, %v161, 0
    %v397 = vsel %vm387, %v162, 0
    %vm398 = vmpackc.low %vm111, %vm110
    %vm399 = vmpackc.low %vm113, %vm112
    %v400 = vsel %vm398, 65537, 0
    %v401 = vsel %vm399, 65537, 0
    %v402 = vlaneseq
    %v403 = vshrl.u32 %v402, 7
    %v404 = vsub.s32 0, %v403
    %v405 = vrot.slane %v400, %v404
    %v406 = vlaneseq
    %v407 = vshrl.u32 %v406, 7
    %v408 = vsub.s32 4, %v407
    %v409 = vrot.slane %v400, %v408
    %v410 = vlaneseq
    %v411 = vshrl.u32 %v410, 7
    %v412 = vsub.s32 0, %v411
    %v413 = vrot.slane %v401, %v412
    %v414 = vlaneseq
    %v415 = vshrl.u32 %v414, 7
    %v416 = vsub.s32 4, %v415
    %v417 = vrot.slane %v401, %v416
    %418 = vrot.lane.b32.xlu0 %v405, 15
    %v419 = vpop.permute.xlu0 %418
    %420 = vrot.lane.b32.xlu0 %v409, 15
    %v421 = vpop.permute.xlu0 %420
    %422 = vrot.lane.b32.xlu0 %v413, 15
    %v423 = vpop.permute.xlu0 %422
    %424 = vrot.lane.b32.xlu0 %v417, 15
    %v425 = vpop.permute.xlu0 %424
    %vm426 = vcmask 121856
    %v427 = vsel %vm426, %v419, %v421
    %v428 = vsel %vm426, %v421, %v423
    %v429 = vsel %vm426, %v423, %v425
    %vm430 = vcmp.ne.s16.totalorder %v419, 0
    %vm431 = vcmp.ne.s16.totalorder %v427, 0
    %vm432 = vcmp.ne.s16.totalorder %v428, 0
    %vm433 = vcmp.ne.s16.totalorder %v429, 0
    %vm434 = vcmp.ne.s16.totalorder %v425, 0
    %v435 = vsel %vm430, %v152, 0
    %v436 = vsel %vm431, %v153, 0
    %v437 = vsel %vm432, %v154, 0
    %v438 = vsel %vm433, %v155, 0
    %v439 = vsel %vm434, %v156, 0
    %v440 = vsel %vm430, %v158, 0
    %v441 = vsel %vm431, %v159, 0
    %v442 = vsel %vm432, %v160, 0
    %v443 = vsel %vm433, %v161, 0
    %v444 = vsel %vm434, %v162, 0
    %vm445 = vmpackc.low %vm99, %vm98
    %vm446 = vmpackc.low %vm101, %vm100
    %v447 = vsel %vm445, 65537, 0
    %v448 = vsel %vm446, 65537, 0
    %v449 = vlaneseq
    %v450 = vshrl.u32 %v449, 7
    %v451 = vsub.s32 0, %v450
    %v452 = vrot.slane %v447, %v451
    %v453 = vlaneseq
    %v454 = vshrl.u32 %v453, 7
    %v455 = vsub.s32 4, %v454
    %v456 = vrot.slane %v447, %v455
    %v457 = vlaneseq
    %v458 = vshrl.u32 %v457, 7
    %v459 = vsub.s32 0, %v458
    %v460 = vrot.slane %v448, %v459
    %v461 = vlaneseq
    %v462 = vshrl.u32 %v461, 7
    %v463 = vsub.s32 4, %v462
    %v464 = vrot.slane %v448, %v463
    %465 = vrot.lane.b32.xlu0 %v452, 16
    %v466 = vpop.permute.xlu0 %465
    %467 = vrot.lane.b32.xlu0 %v456, 16
    %v468 = vpop.permute.xlu0 %467
    %469 = vrot.lane.b32.xlu0 %v460, 16
    %v470 = vpop.permute.xlu0 %469
    %471 = vrot.lane.b32.xlu0 %v464, 16
    %v472 = vpop.permute.xlu0 %471
    %vm473 = vcmask 130048
    %v474 = vsel %vm473, %v466, %v468
    %v475 = vsel %vm473, %v468, %v470
    %v476 = vsel %vm473, %v470, %v472
    %vm477 = vcmp.ne.s16.totalorder %v466, 0
    %vm478 = vcmp.ne.s16.totalorder %v474, 0
    %vm479 = vcmp.ne.s16.totalorder %v475, 0
    %vm480 = vcmp.ne.s16.totalorder %v476, 0
    %vm481 = vcmp.ne.s16.totalorder %v472, 0
    %v482 = vsel %vm477, %v152, 0
    %v483 = vsel %vm478, %v153, 0
    %v484 = vsel %vm479, %v154, 0
    %v485 = vsel %vm480, %v155, 0
    %v486 = vsel %vm481, %v156, 0
    %v487 = vsel %vm477, %v158, 0
    %v488 = vsel %vm478, %v159, 0
    %v489 = vsel %vm479, %v160, 0
    %v490 = vsel %vm480, %v161, 0
    %v491 = vsel %vm481, %v162, 0
    %vm492 = vmpackc.low %vm115, %vm114
    %vm493 = vmpackc.low %vm117, %vm116
    %v494 = vsel %vm492, 65537, 0
    %v495 = vsel %vm493, 65537, 0
    %v496 = vlaneseq
    %v497 = vshrl.u32 %v496, 7
    %v498 = vsub.s32 0, %v497
    %v499 = vrot.slane %v494, %v498
    %v500 = vlaneseq
    %v501 = vshrl.u32 %v500, 7
    %v502 = vsub.s32 4, %v501
    %v503 = vrot.slane %v494, %v502
    %v504 = vlaneseq
    %v505 = vshrl.u32 %v504, 7
    %v506 = vsub.s32 0, %v505
    %v507 = vrot.slane %v495, %v506
    %v508 = vlaneseq
    %v509 = vshrl.u32 %v508, 7
    %v510 = vsub.s32 4, %v509
    %v511 = vrot.slane %v495, %v510
    %512 = vrot.lane.b32.xlu0 %v499, 17
    %v513 = vpop.permute.xlu0 %512
    %514 = vrot.lane.b32.xlu0 %v503, 17
    %v515 = vpop.permute.xlu0 %514
    %516 = vrot.lane.b32.xlu0 %v507, 17
    %v517 = vpop.permute.xlu0 %516
    %518 = vrot.lane.b32.xlu0 %v511, 17
    %v519 = vpop.permute.xlu0 %518
    %vm520 = vcmask 138240
    %v521 = vsel %vm520, %v513, %v515
    %v522 = vsel %vm520, %v515, %v517
    %v523 = vsel %vm520, %v517, %v519
    %vm524 = vcmp.ne.s16.totalorder %v513, 0
    %vm525 = vcmp.ne.s16.totalorder %v521, 0
    %vm526 = vcmp.ne.s16.totalorder %v522, 0
    %vm527 = vcmp.ne.s16.totalorder %v523, 0
    %vm528 = vcmp.ne.s16.totalorder %v519, 0
    %v529 = vsel %vm524, %v152, 0
    %v530 = vsel %vm525, %v153, 0
    %v531 = vsel %vm526, %v154, 0
    %v532 = vsel %vm527, %v155, 0
    %v533 = vsel %vm528, %v156, 0
    %v534 = vsel %vm524, %v158, 0
    %v535 = vsel %vm525, %v159, 0
    %v536 = vsel %vm526, %v160, 0
    %v537 = vsel %vm527, %v161, 0
    %v538 = vsel %vm528, %v162, 0
    %549 = vrot.lane.b32.xlu0 %v247, 127
    %v550 = vpop.permute.xlu0 %549
    %551 = vrot.lane.b32.xlu0 %v248, 127
    %v552 = vpop.permute.xlu0 %551
    %553 = vrot.lane.b32.xlu0 %v249, 127
    %v554 = vpop.permute.xlu0 %553
    %555 = vrot.lane.b32.xlu0 %v250, 127
    %v556 = vpop.permute.xlu0 %555
    %557 = vrot.lane.b32.xlu0 %v251, 127
    %v558 = vpop.permute.xlu0 %557
    %559 = vrot.lane.b32.xlu0 %v252, 127
    %v560 = vpop.permute.xlu0 %559
    %561 = vrot.lane.b32.xlu0 %v253, 127
    %v562 = vpop.permute.xlu0 %561
    %563 = vrot.lane.b32.xlu0 %v254, 127
    %v564 = vpop.permute.xlu0 %563
    %565 = vrot.lane.b32.xlu0 %v255, 127
    %v566 = vpop.permute.xlu0 %565
    %567 = vrot.lane.b32.xlu0 %v256, 127
    %v568 = vpop.permute.xlu0 %567
    %v569 = vsel %vm332, %v550, %v552
    %v570 = vsel %vm332, %v552, %v554
    %v571 = vsel %vm332, %v554, %v556
    %v572 = vsel %vm332, %v556, %v558
    %v573 = vsel %vm332, %v560, %v562
    %v574 = vsel %vm332, %v562, %v564
    %v575 = vsel %vm332, %v564, %v566
    %v576 = vsel %vm332, %v566, %v568
    %587 = vrot.lane.b32.xlu0 %v294, 126
    %v588 = vpop.permute.xlu0 %587
    %589 = vrot.lane.b32.xlu0 %v295, 126
    %v590 = vpop.permute.xlu0 %589
    %591 = vrot.lane.b32.xlu0 %v296, 126
    %v592 = vpop.permute.xlu0 %591
    %593 = vrot.lane.b32.xlu0 %v297, 126
    %v594 = vpop.permute.xlu0 %593
    %595 = vrot.lane.b32.xlu0 %v298, 126
    %v596 = vpop.permute.xlu0 %595
    %597 = vrot.lane.b32.xlu0 %v299, 126
    %v598 = vpop.permute.xlu0 %597
    %599 = vrot.lane.b32.xlu0 %v300, 126
    %v600 = vpop.permute.xlu0 %599
    %601 = vrot.lane.b32.xlu0 %v301, 126
    %v602 = vpop.permute.xlu0 %601
    %603 = vrot.lane.b32.xlu0 %v302, 126
    %v604 = vpop.permute.xlu0 %603
    %605 = vrot.lane.b32.xlu0 %v303, 126
    %v606 = vpop.permute.xlu0 %605
    %vm607 = vcmask 1031168
    %v608 = vsel %vm607, %v588, %v590
    %v609 = vsel %vm607, %v590, %v592
    %v610 = vsel %vm607, %v592, %v594
    %v611 = vsel %vm607, %v594, %v596
    %v612 = vsel %vm607, %v598, %v600
    %v613 = vsel %vm607, %v600, %v602
    %v614 = vsel %vm607, %v602, %v604
    %v615 = vsel %vm607, %v604, %v606
    %626 = vrot.lane.b32.xlu0 %v341, 112
    %v627 = vpop.permute.xlu0 %626
    %628 = vrot.lane.b32.xlu0 %v342, 112
    %v629 = vpop.permute.xlu0 %628
    %630 = vrot.lane.b32.xlu0 %v343, 112
    %v631 = vpop.permute.xlu0 %630
    %632 = vrot.lane.b32.xlu0 %v344, 112
    %v633 = vpop.permute.xlu0 %632
    %634 = vrot.lane.b32.xlu0 %v345, 112
    %v635 = vpop.permute.xlu0 %634
    %636 = vrot.lane.b32.xlu0 %v346, 112
    %v637 = vpop.permute.xlu0 %636
    %638 = vrot.lane.b32.xlu0 %v347, 112
    %v639 = vpop.permute.xlu0 %638
    %640 = vrot.lane.b32.xlu0 %v348, 112
    %v641 = vpop.permute.xlu0 %640
    %642 = vrot.lane.b32.xlu0 %v349, 112
    %v643 = vpop.permute.xlu0 %642
    %644 = vrot.lane.b32.xlu0 %v350, 112
    %v645 = vpop.permute.xlu0 %644
    %v646 = vsel %vm238, %v627, %v629
    %v647 = vsel %vm238, %v629, %v631
    %v648 = vsel %vm238, %v631, %v633
    %v649 = vsel %vm238, %v633, %v635
    %v650 = vsel %vm238, %v637, %v639
    %v651 = vsel %vm238, %v639, %v641
    %v652 = vsel %vm238, %v641, %v643
    %v653 = vsel %vm238, %v643, %v645
    %662 = vrot.lane.b32.xlu0 %v152, 111
    %v663 = vpop.permute.xlu0 %662
    %664 = vrot.lane.b32.xlu0 %v153, 111
    %v665 = vpop.permute.xlu0 %664
    %666 = vrot.lane.b32.xlu0 %v154, 111
    %v667 = vpop.permute.xlu0 %666
    %668 = vrot.lane.b32.xlu0 %v155, 111
    %v669 = vpop.permute.xlu0 %668
    %670 = vrot.lane.b32.xlu0 %v158, 111
    %v671 = vpop.permute.xlu0 %670
    %672 = vrot.lane.b32.xlu0 %v159, 111
    %v673 = vpop.permute.xlu0 %672
    %674 = vrot.lane.b32.xlu0 %v160, 111
    %v675 = vpop.permute.xlu0 %674
    %676 = vrot.lane.b32.xlu0 %v161, 111
    %v677 = vpop.permute.xlu0 %676
    %v678 = vsel %vm191, %v663, %v665
    %v679 = vsel %vm191, %v665, %v667
    %v680 = vsel %vm191, %v667, %v669
    %v681 = vsel %vm191, %v671, %v673
    %v682 = vsel %vm191, %v673, %v675
    %v683 = vsel %vm191, %v675, %v677
    %694 = vrot.lane.b32.xlu0 %v388, 110
    %v695 = vpop.permute.xlu0 %694
    %696 = vrot.lane.b32.xlu0 %v389, 110
    %v697 = vpop.permute.xlu0 %696
    %698 = vrot.lane.b32.xlu0 %v390, 110
    %v699 = vpop.permute.xlu0 %698
    %700 = vrot.lane.b32.xlu0 %v391, 110
    %v701 = vpop.permute.xlu0 %700
    %702 = vrot.lane.b32.xlu0 %v392, 110
    %v703 = vpop.permute.xlu0 %702
    %704 = vrot.lane.b32.xlu0 %v393, 110
    %v705 = vpop.permute.xlu0 %704
    %706 = vrot.lane.b32.xlu0 %v394, 110
    %v707 = vpop.permute.xlu0 %706
    %708 = vrot.lane.b32.xlu0 %v395, 110
    %v709 = vpop.permute.xlu0 %708
    %710 = vrot.lane.b32.xlu0 %v396, 110
    %v711 = vpop.permute.xlu0 %710
    %712 = vrot.lane.b32.xlu0 %v397, 110
    %v713 = vpop.permute.xlu0 %712
    %vm714 = vcmask 900096
    %v715 = vsel %vm714, %v695, %v697
    %v716 = vsel %vm714, %v697, %v699
    %v717 = vsel %vm714, %v699, %v701
    %v718 = vsel %vm714, %v701, %v703
    %v719 = vsel %vm714, %v705, %v707
    %v720 = vsel %vm714, %v707, %v709
    %v721 = vsel %vm714, %v709, %v711
    %v722 = vsel %vm714, %v711, %v713
    %733 = vrot.lane.b32.xlu0 %v435, 96
    %v734 = vpop.permute.xlu0 %733
    %735 = vrot.lane.b32.xlu0 %v436, 96
    %v736 = vpop.permute.xlu0 %735
    %737 = vrot.lane.b32.xlu0 %v437, 96
    %v738 = vpop.permute.xlu0 %737
    %739 = vrot.lane.b32.xlu0 %v438, 96
    %v740 = vpop.permute.xlu0 %739
    %741 = vrot.lane.b32.xlu0 %v439, 96
    %v742 = vpop.permute.xlu0 %741
    %743 = vrot.lane.b32.xlu0 %v440, 96
    %v744 = vpop.permute.xlu0 %743
    %745 = vrot.lane.b32.xlu0 %v441, 96
    %v746 = vpop.permute.xlu0 %745
    %747 = vrot.lane.b32.xlu0 %v442, 96
    %v748 = vpop.permute.xlu0 %747
    %749 = vrot.lane.b32.xlu0 %v443, 96
    %v750 = vpop.permute.xlu0 %749
    %751 = vrot.lane.b32.xlu0 %v444, 96
    %v752 = vpop.permute.xlu0 %751
    %vm753 = vcmask 785408
    %v754 = vsel %vm753, %v734, %v736
    %v755 = vsel %vm753, %v736, %v738
    %v756 = vsel %vm753, %v738, %v740
    %v757 = vsel %vm753, %v740, %v742
    %v758 = vsel %vm753, %v744, %v746
    %v759 = vsel %vm753, %v746, %v748
    %v760 = vsel %vm753, %v748, %v750
    %v761 = vsel %vm753, %v750, %v752
    %772 = vrot.lane.b32.xlu0 %v482, 95
    %v773 = vpop.permute.xlu0 %772
    %774 = vrot.lane.b32.xlu0 %v483, 95
    %v775 = vpop.permute.xlu0 %774
    %776 = vrot.lane.b32.xlu0 %v484, 95
    %v777 = vpop.permute.xlu0 %776
    %778 = vrot.lane.b32.xlu0 %v485, 95
    %v779 = vpop.permute.xlu0 %778
    %780 = vrot.lane.b32.xlu0 %v486, 95
    %v781 = vpop.permute.xlu0 %780
    %782 = vrot.lane.b32.xlu0 %v487, 95
    %v783 = vpop.permute.xlu0 %782
    %784 = vrot.lane.b32.xlu0 %v488, 95
    %v785 = vpop.permute.xlu0 %784
    %786 = vrot.lane.b32.xlu0 %v489, 95
    %v787 = vpop.permute.xlu0 %786
    %788 = vrot.lane.b32.xlu0 %v490, 95
    %v789 = vpop.permute.xlu0 %788
    %790 = vrot.lane.b32.xlu0 %v491, 95
    %v791 = vpop.permute.xlu0 %790
    %vm792 = vcmask 777216
    %v793 = vsel %vm792, %v773, %v775
    %v794 = vsel %vm792, %v775, %v777
    %v795 = vsel %vm792, %v777, %v779
    %v796 = vsel %vm792, %v779, %v781
    %v797 = vsel %vm792, %v783, %v785
    %v798 = vsel %vm792, %v785, %v787
    %v799 = vsel %vm792, %v787, %v789
    %v800 = vsel %vm792, %v789, %v791
    %811 = vrot.lane.b32.xlu0 %v529, 94
    %v812 = vpop.permute.xlu0 %811
    %813 = vrot.lane.b32.xlu0 %v530, 94
    %v814 = vpop.permute.xlu0 %813
    %815 = vrot.lane.b32.xlu0 %v531, 94
    %v816 = vpop.permute.xlu0 %815
    %817 = vrot.lane.b32.xlu0 %v532, 94
    %v818 = vpop.permute.xlu0 %817
    %819 = vrot.lane.b32.xlu0 %v533, 94
    %v820 = vpop.permute.xlu0 %819
    %821 = vrot.lane.b32.xlu0 %v534, 94
    %v822 = vpop.permute.xlu0 %821
    %823 = vrot.lane.b32.xlu0 %v535, 94
    %v824 = vpop.permute.xlu0 %823
    %825 = vrot.lane.b32.xlu0 %v536, 94
    %v826 = vpop.permute.xlu0 %825
    %827 = vrot.lane.b32.xlu0 %v537, 94
    %v828 = vpop.permute.xlu0 %827
    %829 = vrot.lane.b32.xlu0 %v538, 94
    %v830 = vpop.permute.xlu0 %829
    %vm831 = vcmask 769024
    %v832 = vsel %vm831, %v812, %v814
    %v833 = vsel %vm831, %v814, %v816
    %v834 = vsel %vm831, %v816, %v818
    %v835 = vsel %vm831, %v818, %v820
    %v836 = vsel %vm831, %v822, %v824
    %v837 = vsel %vm831, %v824, %v826
    %v838 = vsel %vm831, %v826, %v828
    %v839 = vsel %vm831, %v828, %v830
    %v840 = vld [vmem:[#allocation3] sm:$0xff]
    %v841 = vld [vmem:[#allocation3 + $0x8] sm:$0xf]
    %v842 = vld [vmem:[#allocation3 + $0xc] sm:$0xff]
    %v843 = vld [vmem:[#allocation3 + $0x14] sm:$0xf]
    %v844 = vld [vmem:[#allocation3 + $0x18] sm:$0xff]
    %v845 = vld [vmem:[#allocation3 + $0x20] sm:$0xf]
    %v846 = vld [vmem:[#allocation3 + $0x24] sm:$0xff]
    %v847 = vld [vmem:[#allocation3 + $0x2c] sm:$0xf]
    %v856 = vunpack.c.l.b16 %v840
    %v857 = vunpack.c.h.b16 %v840
    %v858 = vunpack.c.l.b16 %v841
    %v859 = vunpack.c.l.b16 %v842
    %v860 = vunpack.c.h.b16 %v842
    %v861 = vunpack.c.l.b16 %v843
    %v862 = vunpack.c.l.b16 %v844
    %v863 = vunpack.c.h.b16 %v844
    %v864 = vunpack.c.l.b16 %v845
    %v865 = vunpack.c.l.b16 %v846
    %v866 = vunpack.c.h.b16 %v846
    %v867 = vunpack.c.l.b16 %v847
    %v868 = vpack.c.b16 %v859, %v856
    %v869 = vpack.c.b16 %v860, %v857
    %v870 = vpack.c.b16 %v861, %v858
    %v871 = vpack.c.b16 %v865, %v862
    %v872 = vpack.c.b16 %v866, %v863
    %v873 = vpack.c.b16 %v867, %v864
    %888 = vrot.lane.b32.xlu0 %v200, 17
    %v889 = vpop.permute.xlu0 %888
    %890 = vrot.lane.b32.xlu0 %v201, 17
    %v891 = vpop.permute.xlu0 %890
    %892 = vrot.lane.b32.xlu0 %v202, 17
    %v893 = vpop.permute.xlu0 %892
    %894 = vrot.lane.b32.xlu0 %v203, 17
    %v895 = vpop.permute.xlu0 %894
    %896 = vrot.lane.b32.xlu0 %v204, 17
    %v897 = vpop.permute.xlu0 %896
    %898 = vrot.lane.b32.xlu0 %v205, 17
    %v899 = vpop.permute.xlu0 %898
    %900 = vrot.lane.b32.xlu0 %v206, 17
    %v901 = vpop.permute.xlu0 %900
    %902 = vrot.lane.b32.xlu0 %v207, 17
    %v903 = vpop.permute.xlu0 %902
    %904 = vrot.lane.b32.xlu0 %v208, 17
    %v905 = vpop.permute.xlu0 %904
    %906 = vrot.lane.b32.xlu0 %v209, 17
    %v907 = vpop.permute.xlu0 %906
    %908 = vrot.lane.b32.xlu0 %v569, 17
    %v909 = vpop.permute.xlu0 %908
    %910 = vrot.lane.b32.xlu0 %v570, 17
    %v911 = vpop.permute.xlu0 %910
    %912 = vrot.lane.b32.xlu0 %v571, 17
    %v913 = vpop.permute.xlu0 %912
    %914 = vrot.lane.b32.xlu0 %v572, 17
    %v915 = vpop.permute.xlu0 %914
    %916 = vrot.lane.b32.xlu0 %v558, 17
    %v917 = vpop.permute.xlu0 %916
    %918 = vrot.lane.b32.xlu0 %v573, 17
    %v919 = vpop.permute.xlu0 %918
    %920 = vrot.lane.b32.xlu0 %v574, 17
    %v921 = vpop.permute.xlu0 %920
    %922 = vrot.lane.b32.xlu0 %v575, 17
    %v923 = vpop.permute.xlu0 %922
    %924 = vrot.lane.b32.xlu0 %v576, 17
    %v925 = vpop.permute.xlu0 %924
    %926 = vrot.lane.b32.xlu0 %v568, 17
    %v927 = vpop.permute.xlu0 %926
    %928 = vrot.lane.b32.xlu0 %v608, 17
    %v929 = vpop.permute.xlu0 %928
    %930 = vrot.lane.b32.xlu0 %v609, 17
    %v931 = vpop.permute.xlu0 %930
    %932 = vrot.lane.b32.xlu0 %v610, 17
    %v933 = vpop.permute.xlu0 %932
    %934 = vrot.lane.b32.xlu0 %v611, 17
    %v935 = vpop.permute.xlu0 %934
    %936 = vrot.lane.b32.xlu0 %v596, 17
    %v937 = vpop.permute.xlu0 %936
    %938 = vrot.lane.b32.xlu0 %v612, 17
    %v939 = vpop.permute.xlu0 %938
    %940 = vrot.lane.b32.xlu0 %v613, 17
    %v941 = vpop.permute.xlu0 %940
    %942 = vrot.lane.b32.xlu0 %v614, 17
    %v943 = vpop.permute.xlu0 %942
    %944 = vrot.lane.b32.xlu0 %v615, 17
    %v945 = vpop.permute.xlu0 %944
    %946 = vrot.lane.b32.xlu0 %v606, 17
    %v947 = vpop.permute.xlu0 %946
    %948 = vrot.lane.b32.xlu0 %v646, 17
    %v949 = vpop.permute.xlu0 %948
    %950 = vrot.lane.b32.xlu0 %v647, 17
    %v951 = vpop.permute.xlu0 %950
    %952 = vrot.lane.b32.xlu0 %v648, 17
    %v953 = vpop.permute.xlu0 %952
    %954 = vrot.lane.b32.xlu0 %v649, 17
    %v955 = vpop.permute.xlu0 %954
    %956 = vrot.lane.b32.xlu0 %v635, 17
    %v957 = vpop.permute.xlu0 %956
    %958 = vrot.lane.b32.xlu0 %v650, 17
    %v959 = vpop.permute.xlu0 %958
    %960 = vrot.lane.b32.xlu0 %v651, 17
    %v961 = vpop.permute.xlu0 %960
    %962 = vrot.lane.b32.xlu0 %v652, 17
    %v963 = vpop.permute.xlu0 %962
    %964 = vrot.lane.b32.xlu0 %v653, 17
    %v965 = vpop.permute.xlu0 %964
    %966 = vrot.lane.b32.xlu0 %v645, 17
    %v967 = vpop.permute.xlu0 %966
    %968 = vrot.lane.b32.xlu0 %v663, 17
    %v969 = vpop.permute.xlu0 %968
    %970 = vrot.lane.b32.xlu0 %v678, 17
    %v971 = vpop.permute.xlu0 %970
    %972 = vrot.lane.b32.xlu0 %v679, 17
    %v973 = vpop.permute.xlu0 %972
    %974 = vrot.lane.b32.xlu0 %v680, 17
    %v975 = vpop.permute.xlu0 %974
    %976 = vrot.lane.b32.xlu0 %v669, 17
    %v977 = vpop.permute.xlu0 %976
    %978 = vrot.lane.b32.xlu0 %v671, 17
    %v979 = vpop.permute.xlu0 %978
    %980 = vrot.lane.b32.xlu0 %v681, 17
    %v981 = vpop.permute.xlu0 %980
    %982 = vrot.lane.b32.xlu0 %v682, 17
    %v983 = vpop.permute.xlu0 %982
    %984 = vrot.lane.b32.xlu0 %v683, 17
    %v985 = vpop.permute.xlu0 %984
    %986 = vrot.lane.b32.xlu0 %v677, 17
    %v987 = vpop.permute.xlu0 %986
    %988 = vrot.lane.b32.xlu0 %v695, 17
    %v989 = vpop.permute.xlu0 %988
    %990 = vrot.lane.b32.xlu0 %v715, 17
    %v991 = vpop.permute.xlu0 %990
    %992 = vrot.lane.b32.xlu0 %v716, 17
    %v993 = vpop.permute.xlu0 %992
    %994 = vrot.lane.b32.xlu0 %v717, 17
    %v995 = vpop.permute.xlu0 %994
    %996 = vrot.lane.b32.xlu0 %v718, 17
    %v997 = vpop.permute.xlu0 %996
    %998 = vrot.lane.b32.xlu0 %v705, 17
    %v999 = vpop.permute.xlu0 %998
    %1000 = vrot.lane.b32.xlu0 %v719, 17
    %v1001 = vpop.permute.xlu0 %1000
    %1002 = vrot.lane.b32.xlu0 %v720, 17
    %v1003 = vpop.permute.xlu0 %1002
    %1004 = vrot.lane.b32.xlu0 %v721, 17
    %v1005 = vpop.permute.xlu0 %1004
    %1006 = vrot.lane.b32.xlu0 %v722, 17
    %v1007 = vpop.permute.xlu0 %1006
    %1008 = vrot.lane.b32.xlu0 %v734, 17
    %v1009 = vpop.permute.xlu0 %1008
    %1010 = vrot.lane.b32.xlu0 %v754, 17
    %v1011 = vpop.permute.xlu0 %1010
    %1012 = vrot.lane.b32.xlu0 %v755, 17
    %v1013 = vpop.permute.xlu0 %1012
    %1014 = vrot.lane.b32.xlu0 %v756, 17
    %v1015 = vpop.permute.xlu0 %1014
    %1016 = vrot.lane.b32.xlu0 %v757, 17
    %v1017 = vpop.permute.xlu0 %1016
    %1018 = vrot.lane.b32.xlu0 %v744, 17
    %v1019 = vpop.permute.xlu0 %1018
    %1020 = vrot.lane.b32.xlu0 %v758, 17
    %v1021 = vpop.permute.xlu0 %1020
    %1022 = vrot.lane.b32.xlu0 %v759, 17
    %v1023 = vpop.permute.xlu0 %1022
    %1024 = vrot.lane.b32.xlu0 %v760, 17
    %v1025 = vpop.permute.xlu0 %1024
    %1026 = vrot.lane.b32.xlu0 %v761, 17
    %v1027 = vpop.permute.xlu0 %1026
    %1028 = vrot.lane.b32.xlu0 %v773, 17
    %v1029 = vpop.permute.xlu0 %1028
    %1030 = vrot.lane.b32.xlu0 %v793, 17
    %v1031 = vpop.permute.xlu0 %1030
    %1032 = vrot.lane.b32.xlu0 %v794, 17
    %v1033 = vpop.permute.xlu0 %1032
    %1034 = vrot.lane.b32.xlu0 %v795, 17
    %v1035 = vpop.permute.xlu0 %1034
    %1036 = vrot.lane.b32.xlu0 %v796, 17
    %v1037 = vpop.permute.xlu0 %1036
    %1038 = vrot.lane.b32.xlu0 %v783, 17
    %v1039 = vpop.permute.xlu0 %1038
    %1040 = vrot.lane.b32.xlu0 %v797, 17
    %v1041 = vpop.permute.xlu0 %1040
    %1042 = vrot.lane.b32.xlu0 %v798, 17
    %v1043 = vpop.permute.xlu0 %1042
    %1044 = vrot.lane.b32.xlu0 %v799, 17
    %v1045 = vpop.permute.xlu0 %1044
    %1046 = vrot.lane.b32.xlu0 %v800, 17
    %v1047 = vpop.permute.xlu0 %1046
    %1048 = vrot.lane.b32.xlu0 %v812, 17
    %v1049 = vpop.permute.xlu0 %1048
    %1050 = vrot.lane.b32.xlu0 %v832, 17
    %v1051 = vpop.permute.xlu0 %1050
    %1052 = vrot.lane.b32.xlu0 %v833, 17
    %v1053 = vpop.permute.xlu0 %1052
    %1054 = vrot.lane.b32.xlu0 %v834, 17
    %v1055 = vpop.permute.xlu0 %1054
    %1056 = vrot.lane.b32.xlu0 %v835, 17
    %v1057 = vpop.permute.xlu0 %1056
    %1058 = vrot.lane.b32.xlu0 %v822, 17
    %v1059 = vpop.permute.xlu0 %1058
    %1060 = vrot.lane.b32.xlu0 %v836, 17
    %v1061 = vpop.permute.xlu0 %1060
    %1062 = vrot.lane.b32.xlu0 %v837, 17
    %v1063 = vpop.permute.xlu0 %1062
    %1064 = vrot.lane.b32.xlu0 %v838, 17
    %v1065 = vpop.permute.xlu0 %1064
    %1066 = vrot.lane.b32.xlu0 %v839, 17
    %v1067 = vpop.permute.xlu0 %1066
    %v1068 = vsel %vm520, %v889, %v891
    %v1069 = vsel %vm520, %v891, %v893
    %v1070 = vsel %vm520, %v893, %v895
    %v1071 = vsel %vm520, %v895, %v897
    %v1072 = vsel %vm520, %v899, %v901
    %v1073 = vsel %vm520, %v901, %v903
    %v1074 = vsel %vm520, %v903, %v905
    %v1075 = vsel %vm520, %v905, %v907
    %v1076 = vsel %vm520, %v909, %v911
    %v1077 = vsel %vm520, %v911, %v913
    %v1078 = vsel %vm520, %v913, %v915
    %v1079 = vsel %vm520, %v915, %v917
    %v1080 = vsel %vm520, %v919, %v921
    %v1081 = vsel %vm520, %v921, %v923
    %v1082 = vsel %vm520, %v923, %v925
    %v1083 = vsel %vm520, %v925, %v927
    %v1084 = vsel %vm520, %v929, %v931
    %v1085 = vsel %vm520, %v931, %v933
    %v1086 = vsel %vm520, %v933, %v935
    %v1087 = vsel %vm520, %v935, %v937
    %v1088 = vsel %vm520, %v939, %v941
    %v1089 = vsel %vm520, %v941, %v943
    %v1090 = vsel %vm520, %v943, %v945
    %v1091 = vsel %vm520, %v945, %v947
    %v1092 = vsel %vm520, %v949, %v951
    %v1093 = vsel %vm520, %v951, %v953
    %v1094 = vsel %vm520, %v953, %v955
    %v1095 = vsel %vm520, %v955, %v957
    %v1096 = vsel %vm520, %v959, %v961
    %v1097 = vsel %vm520, %v961, %v963
    %v1098 = vsel %vm520, %v963, %v965
    %v1099 = vsel %vm520, %v965, %v967
    %v1100 = vsel %vm520, %v969, %v971
    %v1101 = vsel %vm520, %v971, %v973
    %v1102 = vsel %vm520, %v973, %v975
    %v1103 = vsel %vm520, %v975, %v977
    %v1104 = vsel %vm520, %v979, %v981
    %v1105 = vsel %vm520, %v981, %v983
    %v1106 = vsel %vm520, %v983, %v985
    %v1107 = vsel %vm520, %v985, %v987
    %v1108 = vsel %vm520, %v989, %v991
    %v1109 = vsel %vm520, %v991, %v993
    %v1110 = vsel %vm520, %v993, %v995
    %v1111 = vsel %vm520, %v995, %v997
    %v1112 = vsel %vm520, %v999, %v1001
    %v1113 = vsel %vm520, %v1001, %v1003
    %v1114 = vsel %vm520, %v1003, %v1005
    %v1115 = vsel %vm520, %v1005, %v1007
    %v1116 = vsel %vm520, %v1009, %v1011
    %v1117 = vsel %vm520, %v1011, %v1013
    %v1118 = vsel %vm520, %v1013, %v1015
    %v1119 = vsel %vm520, %v1015, %v1017
    %v1120 = vsel %vm520, %v1019, %v1021
    %v1121 = vsel %vm520, %v1021, %v1023
    %v1122 = vsel %vm520, %v1023, %v1025
    %v1123 = vsel %vm520, %v1025, %v1027
    %v1124 = vsel %vm520, %v1029, %v1031
    %v1125 = vsel %vm520, %v1031, %v1033
    %v1126 = vsel %vm520, %v1033, %v1035
    %v1127 = vsel %vm520, %v1035, %v1037
    %v1128 = vsel %vm520, %v1039, %v1041
    %v1129 = vsel %vm520, %v1041, %v1043
    %v1130 = vsel %vm520, %v1043, %v1045
    %v1131 = vsel %vm520, %v1045, %v1047
    %v1132 = vsel %vm520, %v1049, %v1051
    %v1133 = vsel %vm520, %v1051, %v1053
    %v1134 = vsel %vm520, %v1053, %v1055
    %v1135 = vsel %vm520, %v1055, %v1057
    %v1136 = vsel %vm520, %v1059, %v1061
    %v1137 = vsel %vm520, %v1061, %v1063
    %v1138 = vsel %vm520, %v1063, %v1065
    %v1139 = vsel %vm520, %v1065, %v1067
    %vm1212 = vcmask 261120
    %v1214 = vsel %vm1212, %v870, 0
    %v1217 = vsel %vm1212, %v873, 0
    %1219 = vmatprep.subr.bf16.mxu0 %v1069
    %1220 = vmatpush1.bf16.msra.mxu0 %v1068
    %1221 = vmatprep.subr.bf16.mxu0 %v1073
    %1222 = vmatpush1.bf16.msra.mxu0 %v1072
    %1223 = vmatprep.subr.bf16.mxu0 %v1077
    %1224 = vmatpush1.bf16.msra.mxu0 %v1076
    %1225 = vmatprep.subr.bf16.mxu0 %v1081
    %1226 = vmatpush1.bf16.msra.mxu0 %v1080
    %1227 = vmatprep.subr.bf16.mxu0 %v1085
    %1228 = vmatpush1.bf16.msra.mxu0 %v1084
    %1229 = vmatprep.subr.bf16.mxu0 %v1089
    %1230 = vmatpush1.bf16.msra.mxu0 %v1088
    %1231 = vmatprep.subr.bf16.mxu0 %v1093
    %1232 = vmatpush1.bf16.msra.mxu0 %v1092
    %1233 = vmatprep.subr.bf16.mxu0 %v1097
    %1234 = vmatpush1.bf16.msra.mxu0 %v1096
    %1235 = vmatprep.subr.bf16.mxu0 %v1101
    %1236 = vmatpush1.bf16.msra.mxu0 %v1100
    %1237 = vmatprep.subr.bf16.mxu0 %v1105
    %1238 = vmatpush1.bf16.msra.mxu0 %v1104
    %1239 = vmatprep.subr.bf16.mxu0 %v1109
    %1240 = vmatpush1.bf16.msra.mxu0 %v1108
    %1241 = vmatprep.subr.bf16.mxu0 %v1113
    %1242 = vmatpush1.bf16.msra.mxu0 %v1112
    %1243 = vmatprep.subr.bf16.mxu0 %v1117
    %1244 = vmatpush1.bf16.msra.mxu0 %v1116
    %1245 = vmatprep.subr.bf16.mxu0 %v1121
    %1246 = vmatpush1.bf16.msra.mxu0 %v1120
    %1247 = vmatprep.subr.bf16.mxu0 %v1125
    %1248 = vmatpush1.bf16.msra.mxu0 %v1124
    %1249 = vmatprep.subr.bf16.mxu0 %v1129
    %1250 = vmatpush1.bf16.msra.mxu0 %v1128
    %1251 = vmatprep.mubr.bf16.mxu0 %v869
    %1252 = vmatmul.mubr.bf16.gmra.mrb[0].mxu0 %v868
    %v1253 = vpop.f32.mrb[0].mxu0
    %v1254 = vadd.f32 0.0, %v1253
    %v1255 = vpop.f32.mrb[0].mxu0
    %v1256 = vadd.f32 0.0, %v1255
    %v1257 = vpop.f32.mrb[0].mxu0
    %v1258 = vadd.f32 0.0, %v1257
    %v1259 = vpop.f32.mrb[0].mxu0
    %v1260 = vadd.f32 0.0, %v1259
    %1261 = vmatprep.mubr.bf16.mxu0 %v872
    %1262 = vmatmul.mubr.bf16.gmra.mrb[0].mxu0 %v871
    %v1263 = vpop.f32.mrb[0].mxu0
    %v1264 = vadd.f32 0.0, %v1263
    %v1265 = vpop.f32.mrb[0].mxu0
    %v1266 = vadd.f32 0.0, %v1265
    %v1267 = vpop.f32.mrb[0].mxu0
    %v1268 = vadd.f32 0.0, %v1267
    %v1269 = vpop.f32.mrb[0].mxu0
    %v1270 = vadd.f32 0.0, %v1269
    %1271 = vdwg.mxu0
    %1272 = vmatprep.subr.bf16.mxu0 %v1133
    %1273 = vmatpush1.bf16.msra.mxu0 %v1132
    %1274 = vmatprep.subr.bf16.mxu0 %v1137
    %1275 = vmatpush1.bf16.msra.mxu0 %v1136
    %1276 = vmatprep.subr.bf16.mxu0 0
    %1277 = vmatpush1.bf16.msra.mxu0 0
    %1278 = vmatprep.subr.bf16.mxu0 0
    %1279 = vmatpush1.bf16.msra.mxu0 0
    %1280 = vmatprep.subr.bf16.mxu0 0
    %1281 = vmatpush1.bf16.msra.mxu0 0
    %1282 = vmatprep.subr.bf16.mxu0 0
    %1283 = vmatpush1.bf16.msra.mxu0 0
    %1284 = vmatprep.subr.bf16.mxu0 0
    %1285 = vmatpush1.bf16.msra.mxu0 0
    %1286 = vmatprep.subr.bf16.mxu0 0
    %1287 = vmatpush1.bf16.msra.mxu0 0
    %1288 = vmatprep.subr.bf16.mxu0 0
    %1289 = vmatpush1.bf16.msra.mxu0 0
    %1290 = vmatprep.subr.bf16.mxu0 0
    %1291 = vmatpush1.bf16.msra.mxu0 0
    %1292 = vmatprep.subr.bf16.mxu0 0
    %1293 = vmatpush1.bf16.msra.mxu0 0
    %1294 = vmatprep.subr.bf16.mxu0 0
    %1295 = vmatpush1.bf16.msra.mxu0 0
    %1296 = vmatprep.subr.bf16.mxu0 0
    %1297 = vmatpush1.bf16.msra.mxu0 0
    %1298 = vmatprep.subr.bf16.mxu0 0
    %1299 = vmatpush1.bf16.msra.mxu0 0
    %1300 = vmatprep.subr.bf16.mxu0 0
    %1301 = vmatpush1.bf16.msra.mxu0 0
    %1302 = vmatprep.subr.bf16.mxu0 0
    %1303 = vmatpush1.bf16.msra.mxu0 0
    %1304 = vmatprep.mubr.bf16.mxu0 0
    %1305 = vmatmul.mubr.bf16.gmra.mrb[0].mxu0 %v1214
    %v1306 = vpop.f32.mrb[0].mxu0
    %v1307 = vadd.f32 %v1254, %v1306
    %v1308 = vpop.f32.mrb[0].mxu0
    %v1309 = vadd.f32 %v1256, %v1308
    %v1310 = vpop.f32.mrb[0].mxu0
    %v1311 = vadd.f32 %v1258, %v1310
    %v1312 = vpop.f32.mrb[0].mxu0
    %v1313 = vadd.f32 %v1260, %v1312
    %1314 = vmatprep.mubr.bf16.mxu0 0
    %1315 = vmatmul.mubr.bf16.gmra.mrb[0].mxu0 %v1217
    %v1316 = vpop.f32.mrb[0].mxu0
    %v1317 = vadd.f32 %v1264, %v1316
    %v1318 = vpop.f32.mrb[0].mxu0
    %v1319 = vadd.f32 %v1266, %v1318
    %v1320 = vpop.f32.mrb[0].mxu0
    %v1321 = vadd.f32 %v1268, %v1320
    %v1322 = vpop.f32.mrb[0].mxu0
    %v1323 = vadd.f32 %v1270, %v1322
    %1324 = vdwg.mxu0
    %1325 = vmatprep.subr.bf16.mxu0 %v1071
    %1326 = vmatpush1.bf16.msra.mxu0 %v1070
    %1327 = vmatprep.subr.bf16.mxu0 %v1075
    %1328 = vmatpush1.bf16.msra.mxu0 %v1074
    %1329 = vmatprep.subr.bf16.mxu0 %v1079
    %1330 = vmatpush1.bf16.msra.mxu0 %v1078
    %1331 = vmatprep.subr.bf16.mxu0 %v1083
    %1332 = vmatpush1.bf16.msra.mxu0 %v1082
    %1333 = vmatprep.subr.bf16.mxu0 %v1087
    %1334 = vmatpush1.bf16.msra.mxu0 %v1086
    %1335 = vmatprep.subr.bf16.mxu0 %v1091
    %1336 = vmatpush1.bf16.msra.mxu0 %v1090
    %1337 = vmatprep.subr.bf16.mxu0 %v1095
    %1338 = vmatpush1.bf16.msra.mxu0 %v1094
    %1339 = vmatprep.subr.bf16.mxu0 %v1099
    %1340 = vmatpush1.bf16.msra.mxu0 %v1098
    %1341 = vmatprep.subr.bf16.mxu0 %v1103
    %1342 = vmatpush1.bf16.msra.mxu0 %v1102
    %1343 = vmatprep.subr.bf16.mxu0 %v1107
    %1344 = vmatpush1.bf16.msra.mxu0 %v1106
    %1345 = vmatprep.subr.bf16.mxu0 %v1111
    %1346 = vmatpush1.bf16.msra.mxu0 %v1110
    %1347 = vmatprep.subr.bf16.mxu0 %v1115
    %1348 = vmatpush1.bf16.msra.mxu0 %v1114
    %1349 = vmatprep.subr.bf16.mxu0 %v1119
    %1350 = vmatpush1.bf16.msra.mxu0 %v1118
    %1351 = vmatprep.subr.bf16.mxu0 %v1123
    %1352 = vmatpush1.bf16.msra.mxu0 %v1122
    %1353 = vmatprep.subr.bf16.mxu0 %v1127
    %1354 = vmatpush1.bf16.msra.mxu0 %v1126
    %1355 = vmatprep.subr.bf16.mxu0 %v1131
    %1356 = vmatpush1.bf16.msra.mxu0 %v1130
    %1357 = vmatprep.mubr.bf16.mxu0 %v869
    %1358 = vmatmul.mubr.bf16.gmra.mrb[0].mxu0 %v868
    %v1359 = vpop.f32.mrb[0].mxu0
    %v1360 = vadd.f32 0.0, %v1359
    %v1361 = vpop.f32.mrb[0].mxu0
    %v1362 = vadd.f32 0.0, %v1361
    %v1363 = vpop.f32.mrb[0].mxu0
    %v1364 = vadd.f32 0.0, %v1363
    %v1365 = vpop.f32.mrb[0].mxu0
    %v1366 = vadd.f32 0.0, %v1365
    %1367 = vmatprep.mubr.bf16.mxu0 %v872
    %1368 = vmatmul.mubr.bf16.gmra.mrb[0].mxu0 %v871
    %v1369 = vpop.f32.mrb[0].mxu0
    %v1370 = vadd.f32 0.0, %v1369
    %v1371 = vpop.f32.mrb[0].mxu0
    %v1372 = vadd.f32 0.0, %v1371
    %v1373 = vpop.f32.mrb[0].mxu0
    %v1374 = vadd.f32 0.0, %v1373
    %v1375 = vpop.f32.mrb[0].mxu0
    %v1376 = vadd.f32 0.0, %v1375
    %1377 = vdwg.mxu0
    %1378 = vmatprep.subr.bf16.mxu0 %v1135
    %1379 = vmatpush1.bf16.msra.mxu0 %v1134
    %1380 = vmatprep.subr.bf16.mxu0 %v1139
    %1381 = vmatpush1.bf16.msra.mxu0 %v1138
    %1382 = vmatprep.subr.bf16.mxu0 0
    %1383 = vmatpush1.bf16.msra.mxu0 0
    %1384 = vmatprep.subr.bf16.mxu0 0
    %1385 = vmatpush1.bf16.msra.mxu0 0
    %1386 = vmatprep.subr.bf16.mxu0 0
    %1387 = vmatpush1.bf16.msra.mxu0 0
    %1388 = vmatprep.subr.bf16.mxu0 0
    %1389 = vmatpush1.bf16.msra.mxu0 0
    %1390 = vmatprep.subr.bf16.mxu0 0
    %1391 = vmatpush1.bf16.msra.mxu0 0
    %1392 = vmatprep.subr.bf16.mxu0 0
    %1393 = vmatpush1.bf16.msra.mxu0 0
    %1394 = vmatprep.subr.bf16.mxu0 0
    %1395 = vmatpush1.bf16.msra.mxu0 0
    %1396 = vmatprep.subr.bf16.mxu0 0
    %1397 = vmatpush1.bf16.msra.mxu0 0
    %1398 = vmatprep.subr.bf16.mxu0 0
    %1399 = vmatpush1.bf16.msra.mxu0 0
    %1400 = vmatprep.subr.bf16.mxu0 0
    %1401 = vmatpush1.bf16.msra.mxu0 0
    %1402 = vmatprep.subr.bf16.mxu0 0
    %1403 = vmatpush1.bf16.msra.mxu0 0
    %1404 = vmatprep.subr.bf16.mxu0 0
    %1405 = vmatpush1.bf16.msra.mxu0 0
    %1406 = vmatprep.subr.bf16.mxu0 0
    %1407 = vmatpush1.bf16.msra.mxu0 0
    %1408 = vmatprep.subr.bf16.mxu0 0
    %1409 = vmatpush1.bf16.msra.mxu0 0
    %1410 = vmatprep.mubr.bf16.mxu0 0
    %1411 = vmatmul.mubr.bf16.gmra.mrb[0].mxu0 %v1214
    %v1412 = vpop.f32.mrb[0].mxu0
    %v1413 = vadd.f32 %v1360, %v1412
    %v1414 = vpop.f32.mrb[0].mxu0
    %v1415 = vadd.f32 %v1362, %v1414
    %v1416 = vpop.f32.mrb[0].mxu0
    %v1417 = vadd.f32 %v1364, %v1416
    %v1418 = vpop.f32.mrb[0].mxu0
    %v1419 = vadd.f32 %v1366, %v1418
    %1420 = vmatprep.mubr.bf16.mxu0 0
    %1421 = vmatmul.mubr.bf16.gmra.mrb[0].mxu0 %v1217
    %v1422 = vpop.f32.mrb[0].mxu0
    %v1423 = vadd.f32 %v1370, %v1422
    %v1424 = vpop.f32.mrb[0].mxu0
    %v1425 = vadd.f32 %v1372, %v1424
    %v1426 = vpop.f32.mrb[0].mxu0
    %v1427 = vadd.f32 %v1374, %v1426
    %v1428 = vpop.f32.mrb[0].mxu0
    %v1429 = vadd.f32 %v1376, %v1428
    %1430 = vdwg.mxu0
    %v1431 = vld [vmem:[%s3] sm:$0xff]
    %v1432 = vld [vmem:[%s3 + $0x8] sm:$0xff]
    %v1433 = vld [vmem:[%s3 + $0x10] sm:$0xff]
    %v1434 = vld [vmem:[%s3 + $0x18] sm:$0xff]
    %1436 = vset.pattern.permute.xlu0 0
    %1437 = vperm.xlu0 %1436, %v1431
    %v1438 = vpop.permute.xlu0 %1437
    %1441 = vset.pattern.permute.xlu0 0
    %1442 = vperm.xlu0 %1441, %v1432
    %v1443 = vpop.permute.xlu0 %1442
    %1446 = vset.pattern.permute.xlu0 0
    %1447 = vperm.xlu0 %1446, %v1433
    %v1448 = vpop.permute.xlu0 %1447
    %1451 = vset.pattern.permute.xlu0 0
    %1452 = vperm.xlu0 %1451, %v1434
    %v1453 = vpop.permute.xlu0 %1452
    %v1455 = vmul.f32 %v1307, %v1438
    %v1456 = vmul.f32 %v1309, %v1438
    %v1457 = vmul.f32 %v1413, %v1438
    %v1458 = vmul.f32 %v1415, %v1438
    %v1459 = vmul.f32 %v1311, %v1443
    %v1460 = vmul.f32 %v1313, %v1443
    %v1461 = vmul.f32 %v1417, %v1443
    %v1462 = vmul.f32 %v1419, %v1443
    %v1463 = vmul.f32 %v1317, %v1448
    %v1464 = vmul.f32 %v1319, %v1448
    %v1465 = vmul.f32 %v1423, %v1448
    %v1466 = vmul.f32 %v1425, %v1448
    %v1467 = vmul.f32 %v1321, %v1453
    %v1468 = vmul.f32 %v1323, %v1453
    %v1469 = vmul.f32 %v1427, %v1453
    %v1470 = vmul.f32 %v1429, %v1453
    %v1471 = vld [vmem:[%s4] sm:$0xff]
    %v1472 = vld [vmem:[%s4 + $0x8] sm:$0xff]
    %v1473 = vld [vmem:[%s4 + $0x10] sm:$0xff]
    %v1474 = vld [vmem:[%s4 + $0x18] sm:$0xff]
    %1476 = vset.pattern.permute.xlu0 0
    %1477 = vperm.xlu0 %1476, %v1471
    %v1478 = vpop.permute.xlu0 %1477
    %1481 = vset.pattern.permute.xlu0 0
    %1482 = vperm.xlu0 %1481, %v1472
    %v1483 = vpop.permute.xlu0 %1482
    %1486 = vset.pattern.permute.xlu0 0
    %1487 = vperm.xlu0 %1486, %v1473
    %v1488 = vpop.permute.xlu0 %1487
    %1491 = vset.pattern.permute.xlu0 0
    %1492 = vperm.xlu0 %1491, %v1474
    %v1493 = vpop.permute.xlu0 %1492
    %v1495 = vadd.f32 %v1455, %v1478
    %v1496 = vadd.f32 %v1456, %v1478
    %v1497 = vadd.f32 %v1457, %v1478
    %v1498 = vadd.f32 %v1458, %v1478
    %v1499 = vadd.f32 %v1459, %v1483
    %v1500 = vadd.f32 %v1460, %v1483
    %v1501 = vadd.f32 %v1461, %v1483
    %v1502 = vadd.f32 %v1462, %v1483
    %v1503 = vadd.f32 %v1463, %v1488
    %v1504 = vadd.f32 %v1464, %v1488
    %v1505 = vadd.f32 %v1465, %v1488
    %v1506 = vadd.f32 %v1466, %v1488
    %v1507 = vadd.f32 %v1467, %v1493
    %v1508 = vadd.f32 %v1468, %v1493
    %v1509 = vadd.f32 %v1469, %v1493
    %v1510 = vadd.f32 %v1470, %v1493
    %v1511 = vmax.f32 %v1495, 0.0
    %v1512 = vmax.f32 %v1496, 0.0
    %v1513 = vmax.f32 %v1497, 0.0
    %v1514 = vmax.f32 %v1498, 0.0
    %v1515 = vmax.f32 %v1499, 0.0
    %v1516 = vmax.f32 %v1500, 0.0
    %v1517 = vmax.f32 %v1501, 0.0
    %v1518 = vmax.f32 %v1502, 0.0
    %v1519 = vmax.f32 %v1503, 0.0
    %v1520 = vmax.f32 %v1504, 0.0
    %v1521 = vmax.f32 %v1505, 0.0
    %v1522 = vmax.f32 %v1506, 0.0
    %v1523 = vmax.f32 %v1507, 0.0
    %v1524 = vmax.f32 %v1508, 0.0
    %v1525 = vmax.f32 %v1509, 0.0
    %v1526 = vmax.f32 %v1510, 0.0
    %vm1527 = vcmp.eq.f32.partialorder %v1511, 0.0
    %vm1528 = vcmp.eq.f32.partialorder %v1512, 0.0
    %vm1529 = vcmp.eq.f32.partialorder %v1513, 0.0
    %vm1530 = vcmp.eq.f32.partialorder %v1514, 0.0
    %vm1531 = vcmp.eq.f32.partialorder %v1515, 0.0
    %vm1532 = vcmp.eq.f32.partialorder %v1516, 0.0
    %vm1533 = vcmp.eq.f32.partialorder %v1517, 0.0
    %vm1534 = vcmp.eq.f32.partialorder %v1518, 0.0
    %vm1535 = vcmp.eq.f32.partialorder %v1519, 0.0
    %vm1536 = vcmp.eq.f32.partialorder %v1520, 0.0
    %vm1537 = vcmp.eq.f32.partialorder %v1521, 0.0
    %vm1538 = vcmp.eq.f32.partialorder %v1522, 0.0
    %vm1539 = vcmp.eq.f32.partialorder %v1523, 0.0
    %vm1540 = vcmp.eq.f32.partialorder %v1524, 0.0
    %vm1541 = vcmp.eq.f32.partialorder %v1525, 0.0
    %vm1542 = vcmp.eq.f32.partialorder %v1526, 0.0
    %v1543 = vsel %vm1527, 1.0, 0.0
    %v1544 = vsel %vm1528, 1.0, 0.0
    %v1545 = vsel %vm1529, 1.0, 0.0
    %v1546 = vsel %vm1530, 1.0, 0.0
    %v1547 = vsel %vm1531, 1.0, 0.0
    %v1548 = vsel %vm1532, 1.0, 0.0
    %v1549 = vsel %vm1533, 1.0, 0.0
    %v1550 = vsel %vm1534, 1.0, 0.0
    %v1551 = vsel %vm1535, 1.0, 0.0
    %v1552 = vsel %vm1536, 1.0, 0.0
    %v1553 = vsel %vm1537, 1.0, 0.0
    %v1554 = vsel %vm1538, 1.0, 0.0
    %v1555 = vsel %vm1539, 1.0, 0.0
    %v1556 = vsel %vm1540, 1.0, 0.0
    %v1557 = vsel %vm1541, 1.0, 0.0
    %v1558 = vsel %vm1542, 1.0, 0.0
    %v1559 = vadd.f32 %v1543, %v1544
    %v1560 = vadd.f32 %v1559, %v1545
    %v1561 = vadd.f32 %v1560, %v1546
    %v1562 = vadd.f32 %v1561, %v1547
    %v1563 = vadd.f32 %v1562, %v1548
    %v1564 = vadd.f32 %v1563, %v1549
    %v1565 = vadd.f32 %v1564, %v1550
    %v1566 = vadd.f32 %v1565, %v1551
    %v1567 = vadd.f32 %v1566, %v1552
    %v1568 = vadd.f32 %v1567, %v1553
    %v1569 = vadd.f32 %v1568, %v1554
    %v1570 = vadd.f32 %v1569, %v1555
    %v1571 = vadd.f32 %v1570, %v1556
    %v1572 = vadd.f32 %v1571, %v1557
    %v1573 = vadd.f32 %v1572, %v1558
    %1574 = vadd.xlane.f32.xlu0 %v1573
    %v1575 = vpop.xlane.xlu0 %1574
    %v1576 = vrot.slane %v1575, 4
    %v1577 = vadd.f32 %v1575, %v1576
    %v1578 = vrot.slane %v1577, 2
    %v1579 = vadd.f32 %v1577, %v1578
    %v1580 = vrot.slane %v1579, 1
    %v1581 = vadd.f32 %v1579, %v1580
    %s1582 = vtos %v1581
    %v1583 = vpack.c.bf16 %v1515, %v1511
    %v1584 = vpack.c.bf16 %v1516, %v1512
    %v1585 = vpack.c.bf16 %v1517, %v1513
    %v1586 = vpack.c.bf16 %v1518, %v1514
    %v1587 = vpack.c.bf16 %v1523, %v1519
    %v1588 = vpack.c.bf16 %v1524, %v1520
    %v1589 = vpack.c.bf16 %v1525, %v1521
    %v1590 = vpack.c.bf16 %v1526, %v1522
    %1591 = vst [vmem:[#allocation2 + $0x8] sm:$0xff] %v1583
    %1592 = vst [vmem:[#allocation2 + $0x10] sm:$0xff] %v1584
    %1593 = vst [vmem:[#allocation2 + $0x18] sm:$0xff] %v1585
    %1594 = vst [vmem:[#allocation2 + $0x20] sm:$0xff] %v1586
    %1595 = vst [vmem:[#allocation2 + $0x38] sm:$0xff] %v1587
    %1596 = vst [vmem:[#allocation2 + $0x40] sm:$0xff] %v1588
    %1597 = vst [vmem:[#allocation2 + $0x48] sm:$0xff] %v1589
    %1598 = vst [vmem:[#allocation2 + $0x50] sm:$0xff] %v1590
    %v1599 = vld [vmem:[#allocation2] sm:$0xff]
    %v1600 = vld [vmem:[#allocation2 + $0x8] sm:$0xff]
    %v1601 = vld [vmem:[#allocation2 + $0x10] sm:$0xff]
    %v1602 = vld [vmem:[#allocation2 + $0x18] sm:$0xff]
    %v1603 = vld [vmem:[#allocation2 + $0x20] sm:$0xff]
    %v1604 = vld [vmem:[#allocation2 + $0x28] sm:$0xff]
    %v1605 = vld [vmem:[#allocation2 + $0x30] sm:$0xff]
    %v1606 = vld [vmem:[#allocation2 + $0x38] sm:$0xff]
    %v1607 = vld [vmem:[#allocation2 + $0x40] sm:$0xff]
    %v1608 = vld [vmem:[#allocation2 + $0x48] sm:$0xff]
    %v1609 = vld [vmem:[#allocation2 + $0x50] sm:$0xff]
    %v1610 = vld [vmem:[#allocation2 + $0x58] sm:$0xff]
    %v1611 = vsel %vm195, %v1599, 0
    %v1612 = vsel %vm196, %v1600, 0
    %v1613 = vsel %vm197, %v1601, 0
    %v1614 = vsel %vm198, %v1602, 0
    %v1615 = vsel %vm199, %v1603, 0
    %v1616 = vsel %vm195, %v1605, 0
    %v1617 = vsel %vm196, %v1606, 0
    %v1618 = vsel %vm197, %v1607, 0
    %v1619 = vsel %vm198, %v1608, 0
    %v1620 = vsel %vm199, %v1609, 0
    %v1621 = vsel %vm242, %v1599, 0
    %v1622 = vsel %vm243, %v1600, 0
    %v1623 = vsel %vm244, %v1601, 0
    %v1624 = vsel %vm245, %v1602, 0
    %v1625 = vsel %vm246, %v1603, 0
    %v1626 = vsel %vm242, %v1605, 0
    %v1627 = vsel %vm243, %v1606, 0
    %v1628 = vsel %vm244, %v1607, 0
    %v1629 = vsel %vm245, %v1608, 0
    %v1630 = vsel %vm246, %v1609, 0
    %v1631 = vsel %vm289, %v1599, 0
    %v1632 = vsel %vm290, %v1600, 0
    %v1633 = vsel %vm291, %v1601, 0
    %v1634 = vsel %vm292, %v1602, 0
    %v1635 = vsel %vm293, %v1603, 0
    %v1636 = vsel %vm289, %v1605, 0
    %v1637 = vsel %vm290, %v1606, 0
    %v1638 = vsel %vm291, %v1607, 0
    %v1639 = vsel %vm292, %v1608, 0
    %v1640 = vsel %vm293, %v1609, 0
    %v1641 = vsel %vm336, %v1599, 0
    %v1642 = vsel %vm337, %v1600, 0
    %v1643 = vsel %vm338, %v1601, 0
    %v1644 = vsel %vm339, %v1602, 0
    %v1645 = vsel %vm340, %v1603, 0
    %v1646 = vsel %vm336, %v1605, 0
    %v1647 = vsel %vm337, %v1606, 0
    %v1648 = vsel %vm338, %v1607, 0
    %v1649 = vsel %vm339, %v1608, 0
    %v1650 = vsel %vm340, %v1609, 0
    %v1651 = vsel %vm383, %v1600, 0
    %v1652 = vsel %vm384, %v1601, 0
    %v1653 = vsel %vm385, %v1602, 0
    %v1654 = vsel %vm386, %v1603, 0
    %v1655 = vsel %vm387, %v1604, 0
    %v1656 = vsel %vm383, %v1606, 0
    %v1657 = vsel %vm384, %v1607, 0
    %v1658 = vsel %vm385, %v1608, 0
    %v1659 = vsel %vm386, %v1609, 0
    %v1660 = vsel %vm387, %v1610, 0
    %v1661 = vsel %vm430, %v1600, 0
    %v1662 = vsel %vm431, %v1601, 0
    %v1663 = vsel %vm432, %v1602, 0
    %v1664 = vsel %vm433, %v1603, 0
    %v1665 = vsel %vm434, %v1604, 0
    %v1666 = vsel %vm430, %v1606, 0
    %v1667 = vsel %vm431, %v1607, 0
    %v1668 = vsel %vm432, %v1608, 0
    %v1669 = vsel %vm433, %v1609, 0
    %v1670 = vsel %vm434, %v1610, 0
    %v1671 = vsel %vm477, %v1600, 0
    %v1672 = vsel %vm478, %v1601, 0
    %v1673 = vsel %vm479, %v1602, 0
    %v1674 = vsel %vm480, %v1603, 0
    %v1675 = vsel %vm481, %v1604, 0
    %v1676 = vsel %vm477, %v1606, 0
    %v1677 = vsel %vm478, %v1607, 0
    %v1678 = vsel %vm479, %v1608, 0
    %v1679 = vsel %vm480, %v1609, 0
    %v1680 = vsel %vm481, %v1610, 0
    %v1681 = vsel %vm524, %v1600, 0
    %v1682 = vsel %vm525, %v1601, 0
    %v1683 = vsel %vm526, %v1602, 0
    %v1684 = vsel %vm527, %v1603, 0
    %v1685 = vsel %vm528, %v1604, 0
    %v1686 = vsel %vm524, %v1606, 0
    %v1687 = vsel %vm525, %v1607, 0
    %v1688 = vsel %vm526, %v1608, 0
    %v1689 = vsel %vm527, %v1609, 0
    %v1690 = vsel %vm528, %v1610, 0
    %1701 = vrot.lane.b32.xlu0 %v1621, 127
    %v1702 = vpop.permute.xlu0 %1701
    %1703 = vrot.lane.b32.xlu0 %v1622, 127
    %v1704 = vpop.permute.xlu0 %1703
    %1705 = vrot.lane.b32.xlu0 %v1623, 127
    %v1706 = vpop.permute.xlu0 %1705
    %1707 = vrot.lane.b32.xlu0 %v1624, 127
    %v1708 = vpop.permute.xlu0 %1707
    %1709 = vrot.lane.b32.xlu0 %v1625, 127
    %v1710 = vpop.permute.xlu0 %1709
    %1711 = vrot.lane.b32.xlu0 %v1626, 127
    %v1712 = vpop.permute.xlu0 %1711
    %1713 = vrot.lane.b32.xlu0 %v1627, 127
    %v1714 = vpop.permute.xlu0 %1713
    %1715 = vrot.lane.b32.xlu0 %v1628, 127
    %v1716 = vpop.permute.xlu0 %1715
    %1717 = vrot.lane.b32.xlu0 %v1629, 127
    %v1718 = vpop.permute.xlu0 %1717
    %1719 = vrot.lane.b32.xlu0 %v1630, 127
    %v1720 = vpop.permute.xlu0 %1719
    %v1721 = vsel %vm332, %v1702, %v1704
    %v1722 = vsel %vm332, %v1704, %v1706
    %v1723 = vsel %vm332, %v1706, %v1708
    %v1724 = vsel %vm332, %v1708, %v1710
    %v1725 = vsel %vm332, %v1712, %v1714
    %v1726 = vsel %vm332, %v1714, %v1716
    %v1727 = vsel %vm332, %v1716, %v1718
    %v1728 = vsel %vm332, %v1718, %v1720
    %1739 = vrot.lane.b32.xlu0 %v1631, 126
    %v1740 = vpop.permute.xlu0 %1739
    %1741 = vrot.lane.b32.xlu0 %v1632, 126
    %v1742 = vpop.permute.xlu0 %1741
    %1743 = vrot.lane.b32.xlu0 %v1633, 126
    %v1744 = vpop.permute.xlu0 %1743
    %1745 = vrot.lane.b32.xlu0 %v1634, 126
    %v1746 = vpop.permute.xlu0 %1745
    %1747 = vrot.lane.b32.xlu0 %v1635, 126
    %v1748 = vpop.permute.xlu0 %1747
    %1749 = vrot.lane.b32.xlu0 %v1636, 126
    %v1750 = vpop.permute.xlu0 %1749
    %1751 = vrot.lane.b32.xlu0 %v1637, 126
    %v1752 = vpop.permute.xlu0 %1751
    %1753 = vrot.lane.b32.xlu0 %v1638, 126
    %v1754 = vpop.permute.xlu0 %1753
    %1755 = vrot.lane.b32.xlu0 %v1639, 126
    %v1756 = vpop.permute.xlu0 %1755
    %1757 = vrot.lane.b32.xlu0 %v1640, 126
    %v1758 = vpop.permute.xlu0 %1757
    %v1759 = vsel %vm607, %v1740, %v1742
    %v1760 = vsel %vm607, %v1742, %v1744
    %v1761 = vsel %vm607, %v1744, %v1746
    %v1762 = vsel %vm607, %v1746, %v1748
    %v1763 = vsel %vm607, %v1750, %v1752
    %v1764 = vsel %vm607, %v1752, %v1754
    %v1765 = vsel %vm607, %v1754, %v1756
    %v1766 = vsel %vm607, %v1756, %v1758
    %1777 = vrot.lane.b32.xlu0 %v1641, 112
    %v1778 = vpop.permute.xlu0 %1777
    %1779 = vrot.lane.b32.xlu0 %v1642, 112
    %v1780 = vpop.permute.xlu0 %1779
    %1781 = vrot.lane.b32.xlu0 %v1643, 112
    %v1782 = vpop.permute.xlu0 %1781
    %1783 = vrot.lane.b32.xlu0 %v1644, 112
    %v1784 = vpop.permute.xlu0 %1783
    %1785 = vrot.lane.b32.xlu0 %v1645, 112
    %v1786 = vpop.permute.xlu0 %1785
    %1787 = vrot.lane.b32.xlu0 %v1646, 112
    %v1788 = vpop.permute.xlu0 %1787
    %1789 = vrot.lane.b32.xlu0 %v1647, 112
    %v1790 = vpop.permute.xlu0 %1789
    %1791 = vrot.lane.b32.xlu0 %v1648, 112
    %v1792 = vpop.permute.xlu0 %1791
    %1793 = vrot.lane.b32.xlu0 %v1649, 112
    %v1794 = vpop.permute.xlu0 %1793
    %1795 = vrot.lane.b32.xlu0 %v1650, 112
    %v1796 = vpop.permute.xlu0 %1795
    %v1797 = vsel %vm238, %v1778, %v1780
    %v1798 = vsel %vm238, %v1780, %v1782
    %v1799 = vsel %vm238, %v1782, %v1784
    %v1800 = vsel %vm238, %v1784, %v1786
    %v1801 = vsel %vm238, %v1788, %v1790
    %v1802 = vsel %vm238, %v1790, %v1792
    %v1803 = vsel %vm238, %v1792, %v1794
    %v1804 = vsel %vm238, %v1794, %v1796
    %1813 = vrot.lane.b32.xlu0 %v1600, 111
    %v1814 = vpop.permute.xlu0 %1813
    %1815 = vrot.lane.b32.xlu0 %v1601, 111
    %v1816 = vpop.permute.xlu0 %1815
    %1817 = vrot.lane.b32.xlu0 %v1602, 111
    %v1818 = vpop.permute.xlu0 %1817
    %1819 = vrot.lane.b32.xlu0 %v1603, 111
    %v1820 = vpop.permute.xlu0 %1819
    %1821 = vrot.lane.b32.xlu0 %v1606, 111
    %v1822 = vpop.permute.xlu0 %1821
    %1823 = vrot.lane.b32.xlu0 %v1607, 111
    %v1824 = vpop.permute.xlu0 %1823
    %1825 = vrot.lane.b32.xlu0 %v1608, 111
    %v1826 = vpop.permute.xlu0 %1825
    %1827 = vrot.lane.b32.xlu0 %v1609, 111
    %v1828 = vpop.permute.xlu0 %1827
    %v1829 = vsel %vm191, %v1814, %v1816
    %v1830 = vsel %vm191, %v1816, %v1818
    %v1831 = vsel %vm191, %v1818, %v1820
    %v1832 = vsel %vm191, %v1822, %v1824
    %v1833 = vsel %vm191, %v1824, %v1826
    %v1834 = vsel %vm191, %v1826, %v1828
    %1845 = vrot.lane.b32.xlu0 %v1651, 110
    %v1846 = vpop.permute.xlu0 %1845
    %1847 = vrot.lane.b32.xlu0 %v1652, 110
    %v1848 = vpop.permute.xlu0 %1847
    %1849 = vrot.lane.b32.xlu0 %v1653, 110
    %v1850 = vpop.permute.xlu0 %1849
    %1851 = vrot.lane.b32.xlu0 %v1654, 110
    %v1852 = vpop.permute.xlu0 %1851
    %1853 = vrot.lane.b32.xlu0 %v1655, 110
    %v1854 = vpop.permute.xlu0 %1853
    %1855 = vrot.lane.b32.xlu0 %v1656, 110
    %v1856 = vpop.permute.xlu0 %1855
    %1857 = vrot.lane.b32.xlu0 %v1657, 110
    %v1858 = vpop.permute.xlu0 %1857
    %1859 = vrot.lane.b32.xlu0 %v1658, 110
    %v1860 = vpop.permute.xlu0 %1859
    %1861 = vrot.lane.b32.xlu0 %v1659, 110
    %v1862 = vpop.permute.xlu0 %1861
    %1863 = vrot.lane.b32.xlu0 %v1660, 110
    %v1864 = vpop.permute.xlu0 %1863
    %v1865 = vsel %vm714, %v1846, %v1848
    %v1866 = vsel %vm714, %v1848, %v1850
    %v1867 = vsel %vm714, %v1850, %v1852
    %v1868 = vsel %vm714, %v1852, %v1854
    %v1869 = vsel %vm714, %v1856, %v1858
    %v1870 = vsel %vm714, %v1858, %v1860
    %v1871 = vsel %vm714, %v1860, %v1862
    %v1872 = vsel %vm714, %v1862, %v1864
    %1883 = vrot.lane.b32.xlu0 %v1661, 96
    %v1884 = vpop.permute.xlu0 %1883
    %1885 = vrot.lane.b32.xlu0 %v1662, 96
    %v1886 = vpop.permute.xlu0 %1885
    %1887 = vrot.lane.b32.xlu0 %v1663, 96
    %v1888 = vpop.permute.xlu0 %1887
    %1889 = vrot.lane.b32.xlu0 %v1664, 96
    %v1890 = vpop.permute.xlu0 %1889
    %1891 = vrot.lane.b32.xlu0 %v1665, 96
    %v1892 = vpop.permute.xlu0 %1891
    %1893 = vrot.lane.b32.xlu0 %v1666, 96
    %v1894 = vpop.permute.xlu0 %1893
    %1895 = vrot.lane.b32.xlu0 %v1667, 96
    %v1896 = vpop.permute.xlu0 %1895
    %1897 = vrot.lane.b32.xlu0 %v1668, 96
    %v1898 = vpop.permute.xlu0 %1897
    %1899 = vrot.lane.b32.xlu0 %v1669, 96
    %v1900 = vpop.permute.xlu0 %1899
    %1901 = vrot.lane.b32.xlu0 %v1670, 96
    %v1902 = vpop.permute.xlu0 %1901
    %v1903 = vsel %vm753, %v1884, %v1886
    %v1904 = vsel %vm753, %v1886, %v1888
    %v1905 = vsel %vm753, %v1888, %v1890
    %v1906 = vsel %vm753, %v1890, %v1892
    %v1907 = vsel %vm753, %v1894, %v1896
    %v1908 = vsel %vm753, %v1896, %v1898
    %v1909 = vsel %vm753, %v1898, %v1900
    %v1910 = vsel %vm753, %v1900, %v1902
    %1921 = vrot.lane.b32.xlu0 %v1671, 95
    %v1922 = vpop.permute.xlu0 %1921
    %1923 = vrot.lane.b32.xlu0 %v1672, 95
    %v1924 = vpop.permute.xlu0 %1923
    %1925 = vrot.lane.b32.xlu0 %v1673, 95
    %v1926 = vpop.permute.xlu0 %1925
    %1927 = vrot.lane.b32.xlu0 %v1674, 95
    %v1928 = vpop.permute.xlu0 %1927
    %1929 = vrot.lane.b32.xlu0 %v1675, 95
    %v1930 = vpop.permute.xlu0 %1929
    %1931 = vrot.lane.b32.xlu0 %v1676, 95
    %v1932 = vpop.permute.xlu0 %1931
    %1933 = vrot.lane.b32.xlu0 %v1677, 95
    %v1934 = vpop.permute.xlu0 %1933
    %1935 = vrot.lane.b32.xlu0 %v1678, 95
    %v1936 = vpop.permute.xlu0 %1935
    %1937 = vrot.lane.b32.xlu0 %v1679, 95
    %v1938 = vpop.permute.xlu0 %1937
    %1939 = vrot.lane.b32.xlu0 %v1680, 95
    %v1940 = vpop.permute.xlu0 %1939
    %v1941 = vsel %vm792, %v1922, %v1924
    %v1942 = vsel %vm792, %v1924, %v1926
    %v1943 = vsel %vm792, %v1926, %v1928
    %v1944 = vsel %vm792, %v1928, %v1930
    %v1945 = vsel %vm792, %v1932, %v1934
    %v1946 = vsel %vm792, %v1934, %v1936
    %v1947 = vsel %vm792, %v1936, %v1938
    %v1948 = vsel %vm792, %v1938, %v1940
    %1959 = vrot.lane.b32.xlu0 %v1681, 94
    %v1960 = vpop.permute.xlu0 %1959
    %1961 = vrot.lane.b32.xlu0 %v1682, 94
    %v1962 = vpop.permute.xlu0 %1961
    %1963 = vrot.lane.b32.xlu0 %v1683, 94
    %v1964 = vpop.permute.xlu0 %1963
    %1965 = vrot.lane.b32.xlu0 %v1684, 94
    %v1966 = vpop.permute.xlu0 %1965
    %1967 = vrot.lane.b32.xlu0 %v1685, 94
    %v1968 = vpop.permute.xlu0 %1967
    %1969 = vrot.lane.b32.xlu0 %v1686, 94
    %v1970 = vpop.permute.xlu0 %1969
    %1971 = vrot.lane.b32.xlu0 %v1687, 94
    %v1972 = vpop.permute.xlu0 %1971
    %1973 = vrot.lane.b32.xlu0 %v1688, 94
    %v1974 = vpop.permute.xlu0 %1973
    %1975 = vrot.lane.b32.xlu0 %v1689, 94
    %v1976 = vpop.permute.xlu0 %1975
    %1977 = vrot.lane.b32.xlu0 %v1690, 94
    %v1978 = vpop.permute.xlu0 %1977
    %v1979 = vsel %vm831, %v1960, %v1962
    %v1980 = vsel %vm831, %v1962, %v1964
    %v1981 = vsel %vm831, %v1964, %v1966
    %v1982 = vsel %vm831, %v1966, %v1968
    %v1983 = vsel %vm831, %v1970, %v1972
    %v1984 = vsel %vm831, %v1972, %v1974
    %v1985 = vsel %vm831, %v1974, %v1976
    %v1986 = vsel %vm831, %v1976, %v1978
    %v1987 = vld [vmem:[#allocation7] sm:$0xff]
    %v1988 = vld [vmem:[#allocation7 + $0x8] sm:$0xf]
    %v1989 = vld [vmem:[#allocation7 + $0xc] sm:$0xff]
    %v1990 = vld [vmem:[#allocation7 + $0x14] sm:$0xf]
    %v1991 = vld [vmem:[#allocation7 + $0x18] sm:$0xff]
    %v1992 = vld [vmem:[#allocation7 + $0x20] sm:$0xf]
    %v1993 = vld [vmem:[#allocation7 + $0x24] sm:$0xff]
    %v1994 = vld [vmem:[#allocation7 + $0x2c] sm:$0xf]
    %v2003 = vunpack.c.l.b16 %v1987
    %v2004 = vunpack.c.h.b16 %v1987
    %v2005 = vunpack.c.l.b16 %v1988
    %v2006 = vunpack.c.l.b16 %v1989
    %v2007 = vunpack.c.h.b16 %v1989
    %v2008 = vunpack.c.l.b16 %v1990
    %v2009 = vunpack.c.l.b16 %v1991
    %v2010 = vunpack.c.h.b16 %v1991
    %v2011 = vunpack.c.l.b16 %v1992
    %v2012 = vunpack.c.l.b16 %v1993
    %v2013 = vunpack.c.h.b16 %v1993
    %v2014 = vunpack.c.l.b16 %v1994
    %v2015 = vpack.c.b16 %v2006, %v2003
    %v2016 = vpack.c.b16 %v2007, %v2004
    %v2017 = vpack.c.b16 %v2008, %v2005
    %v2018 = vpack.c.b16 %v2012, %v2009
    %v2019 = vpack.c.b16 %v2013, %v2010
    %v2020 = vpack.c.b16 %v2014, %v2011
    %2035 = vrot.lane.b32.xlu0 %v1611, 17
    %v2036 = vpop.permute.xlu0 %2035
    %2037 = vrot.lane.b32.xlu0 %v1612, 17
    %v2038 = vpop.permute.xlu0 %2037
    %2039 = vrot.lane.b32.xlu0 %v1613, 17
    %v2040 = vpop.permute.xlu0 %2039
    %2041 = vrot.lane.b32.xlu0 %v1614, 17
    %v2042 = vpop.permute.xlu0 %2041
    %2043 = vrot.lane.b32.xlu0 %v1615, 17
    %v2044 = vpop.permute.xlu0 %2043
    %2045 = vrot.lane.b32.xlu0 %v1616, 17
    %v2046 = vpop.permute.xlu0 %2045
    %2047 = vrot.lane.b32.xlu0 %v1617, 17
    %v2048 = vpop.permute.xlu0 %2047
    %2049 = vrot.lane.b32.xlu0 %v1618, 17
    %v2050 = vpop.permute.xlu0 %2049
    %2051 = vrot.lane.b32.xlu0 %v1619, 17
    %v2052 = vpop.permute.xlu0 %2051
    %2053 = vrot.lane.b32.xlu0 %v1620, 17
    %v2054 = vpop.permute.xlu0 %2053
    %2055 = vrot.lane.b32.xlu0 %v1721, 17
    %v2056 = vpop.permute.xlu0 %2055
    %2057 = vrot.lane.b32.xlu0 %v1722, 17
    %v2058 = vpop.permute.xlu0 %2057
    %2059 = vrot.lane.b32.xlu0 %v1723, 17
    %v2060 = vpop.permute.xlu0 %2059
    %2061 = vrot.lane.b32.xlu0 %v1724, 17
    %v2062 = vpop.permute.xlu0 %2061
    %2063 = vrot.lane.b32.xlu0 %v1710, 17
    %v2064 = vpop.permute.xlu0 %2063
    %2065 = vrot.lane.b32.xlu0 %v1725, 17
    %v2066 = vpop.permute.xlu0 %2065
    %2067 = vrot.lane.b32.xlu0 %v1726, 17
    %v2068 = vpop.permute.xlu0 %2067
    %2069 = vrot.lane.b32.xlu0 %v1727, 17
    %v2070 = vpop.permute.xlu0 %2069
    %2071 = vrot.lane.b32.xlu0 %v1728, 17
    %v2072 = vpop.permute.xlu0 %2071
    %2073 = vrot.lane.b32.xlu0 %v1720, 17
    %v2074 = vpop.permute.xlu0 %2073
    %2075 = vrot.lane.b32.xlu0 %v1759, 17
    %v2076 = vpop.permute.xlu0 %2075
    %2077 = vrot.lane.b32.xlu0 %v1760, 17
    %v2078 = vpop.permute.xlu0 %2077
    %2079 = vrot.lane.b32.xlu0 %v1761, 17
    %v2080 = vpop.permute.xlu0 %2079
    %2081 = vrot.lane.b32.xlu0 %v1762, 17
    %v2082 = vpop.permute.xlu0 %2081
    %2083 = vrot.lane.b32.xlu0 %v1748, 17
    %v2084 = vpop.permute.xlu0 %2083
    %2085 = vrot.lane.b32.xlu0 %v1763, 17
    %v2086 = vpop.permute.xlu0 %2085
    %2087 = vrot.lane.b32.xlu0 %v1764, 17
    %v2088 = vpop.permute.xlu0 %2087
    %2089 = vrot.lane.b32.xlu0 %v1765, 17
    %v2090 = vpop.permute.xlu0 %2089
    %2091 = vrot.lane.b32.xlu0 %v1766, 17
    %v2092 = vpop.permute.xlu0 %2091
    %2093 = vrot.lane.b32.xlu0 %v1758, 17
    %v2094 = vpop.permute.xlu0 %2093
    %2095 = vrot.lane.b32.xlu0 %v1797, 17
    %v2096 = vpop.permute.xlu0 %2095
    %2097 = vrot.lane.b32.xlu0 %v1798, 17
    %v2098 = vpop.permute.xlu0 %2097
    %2099 = vrot.lane.b32.xlu0 %v1799, 17
    %v2100 = vpop.permute.xlu0 %2099
    %2101 = vrot.lane.b32.xlu0 %v1800, 17
    %v2102 = vpop.permute.xlu0 %2101
    %2103 = vrot.lane.b32.xlu0 %v1786, 17
    %v2104 = vpop.permute.xlu0 %2103
    %2105 = vrot.lane.b32.xlu0 %v1801, 17
    %v2106 = vpop.permute.xlu0 %2105
    %2107 = vrot.lane.b32.xlu0 %v1802, 17
    %v2108 = vpop.permute.xlu0 %2107
    %2109 = vrot.lane.b32.xlu0 %v1803, 17
    %v2110 = vpop.permute.xlu0 %2109
    %2111 = vrot.lane.b32.xlu0 %v1804, 17
    %v2112 = vpop.permute.xlu0 %2111
    %2113 = vrot.lane.b32.xlu0 %v1796, 17
    %v2114 = vpop.permute.xlu0 %2113
    %2115 = vrot.lane.b32.xlu0 %v1814, 17
    %v2116 = vpop.permute.xlu0 %2115
    %2117 = vrot.lane.b32.xlu0 %v1829, 17
    %v2118 = vpop.permute.xlu0 %2117
    %2119 = vrot.lane.b32.xlu0 %v1830, 17
    %v2120 = vpop.permute.xlu0 %2119
    %2121 = vrot.lane.b32.xlu0 %v1831, 17
    %v2122 = vpop.permute.xlu0 %2121
    %2123 = vrot.lane.b32.xlu0 %v1820, 17
    %v2124 = vpop.permute.xlu0 %2123
    %2125 = vrot.lane.b32.xlu0 %v1822, 17
    %v2126 = vpop.permute.xlu0 %2125
    %2127 = vrot.lane.b32.xlu0 %v1832, 17
    %v2128 = vpop.permute.xlu0 %2127
    %2129 = vrot.lane.b32.xlu0 %v1833, 17
    %v2130 = vpop.permute.xlu0 %2129
    %2131 = vrot.lane.b32.xlu0 %v1834, 17
    %v2132 = vpop.permute.xlu0 %2131
    %2133 = vrot.lane.b32.xlu0 %v1828, 17
    %v2134 = vpop.permute.xlu0 %2133
    %2135 = vrot.lane.b32.xlu0 %v1846, 17
    %v2136 = vpop.permute.xlu0 %2135
    %2137 = vrot.lane.b32.xlu0 %v1865, 17
    %v2138 = vpop.permute.xlu0 %2137
    %2139 = vrot.lane.b32.xlu0 %v1866, 17
    %v2140 = vpop.permute.xlu0 %2139
    %2141 = vrot.lane.b32.xlu0 %v1867, 17
    %v2142 = vpop.permute.xlu0 %2141
    %2143 = vrot.lane.b32.xlu0 %v1868, 17
    %v2144 = vpop.permute.xlu0 %2143
    %2145 = vrot.lane.b32.xlu0 %v1856, 17
    %v2146 = vpop.permute.xlu0 %2145
    %2147 = vrot.lane.b32.xlu0 %v1869, 17
    %v2148 = vpop.permute.xlu0 %2147
    %2149 = vrot.lane.b32.xlu0 %v1870, 17
    %v2150 = vpop.permute.xlu0 %2149
    %2151 = vrot.lane.b32.xlu0 %v1871, 17
    %v2152 = vpop.permute.xlu0 %2151
    %2153 = vrot.lane.b32.xlu0 %v1872, 17
    %v2154 = vpop.permute.xlu0 %2153
    %2155 = vrot.lane.b32.xlu0 %v1884, 17
    %v2156 = vpop.permute.xlu0 %2155
    %2157 = vrot.lane.b32.xlu0 %v1903, 17
    %v2158 = vpop.permute.xlu0 %2157
    %2159 = vrot.lane.b32.xlu0 %v1904, 17
    %v2160 = vpop.permute.xlu0 %2159
    %2161 = vrot.lane.b32.xlu0 %v1905, 17
    %v2162 = vpop.permute.xlu0 %2161
    %2163 = vrot.lane.b32.xlu0 %v1906, 17
    %v2164 = vpop.permute.xlu0 %2163
    %2165 = vrot.lane.b32.xlu0 %v1894, 17
    %v2166 = vpop.permute.xlu0 %2165
    %2167 = vrot.lane.b32.xlu0 %v1907, 17
    %v2168 = vpop.permute.xlu0 %2167
    %2169 = vrot.lane.b32.xlu0 %v1908, 17
    %v2170 = vpop.permute.xlu0 %2169
    %2171 = vrot.lane.b32.xlu0 %v1909, 17
    %v2172 = vpop.permute.xlu0 %2171
    %2173 = vrot.lane.b32.xlu0 %v1910, 17
    %v2174 = vpop.permute.xlu0 %2173
    %2175 = vrot.lane.b32.xlu0 %v1922, 17
    %v2176 = vpop.permute.xlu0 %2175
    %2177 = vrot.lane.b32.xlu0 %v1941, 17
    %v2178 = vpop.permute.xlu0 %2177
    %2179 = vrot.lane.b32.xlu0 %v1942, 17
    %v2180 = vpop.permute.xlu0 %2179
    %2181 = vrot.lane.b32.xlu0 %v1943, 17
    %v2182 = vpop.permute.xlu0 %2181
    %2183 = vrot.lane.b32.xlu0 %v1944, 17
    %v2184 = vpop.permute.xlu0 %2183
    %2185 = vrot.lane.b32.xlu0 %v1932, 17
    %v2186 = vpop.permute.xlu0 %2185
    %2187 = vrot.lane.b32.xlu0 %v1945, 17
    %v2188 = vpop.permute.xlu0 %2187
    %2189 = vrot.lane.b32.xlu0 %v1946, 17
    %v2190 = vpop.permute.xlu0 %2189
    %2191 = vrot.lane.b32.xlu0 %v1947, 17
    %v2192 = vpop.permute.xlu0 %2191
    %2193 = vrot.lane.b32.xlu0 %v1948, 17
    %v2194 = vpop.permute.xlu0 %2193
    %2195 = vrot.lane.b32.xlu0 %v1960, 17
    %v2196 = vpop.permute.xlu0 %2195
    %2197 = vrot.lane.b32.xlu0 %v1979, 17
    %v2198 = vpop.permute.xlu0 %2197
    %2199 = vrot.lane.b32.xlu0 %v1980, 17
    %v2200 = vpop.permute.xlu0 %2199
    %2201 = vrot.lane.b32.xlu0 %v1981, 17
    %v2202 = vpop.permute.xlu0 %2201
    %2203 = vrot.lane.b32.xlu0 %v1982, 17
    %v2204 = vpop.permute.xlu0 %2203
    %2205 = vrot.lane.b32.xlu0 %v1970, 17
    %v2206 = vpop.permute.xlu0 %2205
    %2207 = vrot.lane.b32.xlu0 %v1983, 17
    %v2208 = vpop.permute.xlu0 %2207
    %2209 = vrot.lane.b32.xlu0 %v1984, 17
    %v2210 = vpop.permute.xlu0 %2209
    %2211 = vrot.lane.b32.xlu0 %v1985, 17
    %v2212 = vpop.permute.xlu0 %2211
    %2213 = vrot.lane.b32.xlu0 %v1986, 17
    %v2214 = vpop.permute.xlu0 %2213
    %v2215 = vsel %vm520, %v2036, %v2038
    %v2216 = vsel %vm520, %v2038, %v2040
    %v2217 = vsel %vm520, %v2040, %v2042
    %v2218 = vsel %vm520, %v2042, %v2044
    %v2219 = vsel %vm520, %v2046, %v2048
    %v2220 = vsel %vm520, %v2048, %v2050
    %v2221 = vsel %vm520, %v2050, %v2052
    %v2222 = vsel %vm520, %v2052, %v2054
    %v2223 = vsel %vm520, %v2056, %v2058
    %v2224 = vsel %vm520, %v2058, %v2060
    %v2225 = vsel %vm520, %v2060, %v2062
    %v2226 = vsel %vm520, %v2062, %v2064
    %v2227 = vsel %vm520, %v2066, %v2068
    %v2228 = vsel %vm520, %v2068, %v2070
    %v2229 = vsel %vm520, %v2070, %v2072
    %v2230 = vsel %vm520, %v2072, %v2074
    %v2231 = vsel %vm520, %v2076, %v2078
    %v2232 = vsel %vm520, %v2078, %v2080
    %v2233 = vsel %vm520, %v2080, %v2082
    %v2234 = vsel %vm520, %v2082, %v2084
    %v2235 = vsel %vm520, %v2086, %v2088
    %v2236 = vsel %vm520, %v2088, %v2090
    %v2237 = vsel %vm520, %v2090, %v2092
    %v2238 = vsel %vm520, %v2092, %v2094
    %v2239 = vsel %vm520, %v2096, %v2098
    %v2240 = vsel %vm520, %v2098, %v2100
    %v2241 = vsel %vm520, %v2100, %v2102
    %v2242 = vsel %vm520, %v2102, %v2104
    %v2243 = vsel %vm520, %v2106, %v2108
    %v2244 = vsel %vm520, %v2108, %v2110
    %v2245 = vsel %vm520, %v2110, %v2112
    %v2246 = vsel %vm520, %v2112, %v2114
    %v2247 = vsel %vm520, %v2116, %v2118
    %v2248 = vsel %vm520, %v2118, %v2120
    %v2249 = vsel %vm520, %v2120, %v2122
    %v2250 = vsel %vm520, %v2122, %v2124
    %v2251 = vsel %vm520, %v2126, %v2128
    %v2252 = vsel %vm520, %v2128, %v2130
    %v2253 = vsel %vm520, %v2130, %v2132
    %v2254 = vsel %vm520, %v2132, %v2134
    %v2255 = vsel %vm520, %v2136, %v2138
    %v2256 = vsel %vm520, %v2138, %v2140
    %v2257 = vsel %vm520, %v2140, %v2142
    %v2258 = vsel %vm520, %v2142, %v2144
    %v2259 = vsel %vm520, %v2146, %v2148
    %v2260 = vsel %vm520, %v2148, %v2150
    %v2261 = vsel %vm520, %v2150, %v2152
    %v2262 = vsel %vm520, %v2152, %v2154
    %v2263 = vsel %vm520, %v2156, %v2158
    %v2264 = vsel %vm520, %v2158, %v2160
    %v2265 = vsel %vm520, %v2160, %v2162
    %v2266 = vsel %vm520, %v2162, %v2164
    %v2267 = vsel %vm520, %v2166, %v2168
    %v2268 = vsel %vm520, %v2168, %v2170
    %v2269 = vsel %vm520, %v2170, %v2172
    %v2270 = vsel %vm520, %v2172, %v2174
    %v2271 = vsel %vm520, %v2176, %v2178
    %v2272 = vsel %vm520, %v2178, %v2180
    %v2273 = vsel %vm520, %v2180, %v2182
    %v2274 = vsel %vm520, %v2182, %v2184
    %v2275 = vsel %vm520, %v2186, %v2188
    %v2276 = vsel %vm520, %v2188, %v2190
    %v2277 = vsel %vm520, %v2190, %v2192
    %v2278 = vsel %vm520, %v2192, %v2194
    %v2279 = vsel %vm520, %v2196, %v2198
    %v2280 = vsel %vm520, %v2198, %v2200
    %v2281 = vsel %vm520, %v2200, %v2202
    %v2282 = vsel %vm520, %v2202, %v2204
    %v2283 = vsel %vm520, %v2206, %v2208
    %v2284 = vsel %vm520, %v2208, %v2210
    %v2285 = vsel %vm520, %v2210, %v2212
    %v2286 = vsel %vm520, %v2212, %v2214
    %v2360 = vsel %vm1212, %v2017, 0
    %v2363 = vsel %vm1212, %v2020, 0
    %2365 = vmatprep.subr.bf16.mxu0 %v2216
    %2366 = vmatpush1.bf16.msra.mxu0 %v2215
    %2367 = vmatprep.subr.bf16.mxu0 %v2220
    %2368 = vmatpush1.bf16.msra.mxu0 %v2219
    %2369 = vmatprep.subr.bf16.mxu0 %v2224
    %2370 = vmatpush1.bf16.msra.mxu0 %v2223
    %2371 = vmatprep.subr.bf16.mxu0 %v2228
    %2372 = vmatpush1.bf16.msra.mxu0 %v2227
    %2373 = vmatprep.subr.bf16.mxu0 %v2232
    %2374 = vmatpush1.bf16.msra.mxu0 %v2231
    %2375 = vmatprep.subr.bf16.mxu0 %v2236
    %2376 = vmatpush1.bf16.msra.mxu0 %v2235
    %2377 = vmatprep.subr.bf16.mxu0 %v2240
    %2378 = vmatpush1.bf16.msra.mxu0 %v2239
    %2379 = vmatprep.subr.bf16.mxu0 %v2244
    %2380 = vmatpush1.bf16.msra.mxu0 %v2243
    %2381 = vmatprep.subr.bf16.mxu0 %v2248
    %2382 = vmatpush1.bf16.msra.mxu0 %v2247
    %2383 = vmatprep.subr.bf16.mxu0 %v2252
    %2384 = vmatpush1.bf16.msra.mxu0 %v2251
    %2385 = vmatprep.subr.bf16.mxu0 %v2256
    %2386 = vmatpush1.bf16.msra.mxu0 %v2255
    %2387 = vmatprep.subr.bf16.mxu0 %v2260
    %2388 = vmatpush1.bf16.msra.mxu0 %v2259
    %2389 = vmatprep.subr.bf16.mxu0 %v2264
    %2390 = vmatpush1.bf16.msra.mxu0 %v2263
    %2391 = vmatprep.subr.bf16.mxu0 %v2268
    %2392 = vmatpush1.bf16.msra.mxu0 %v2267
    %2393 = vmatprep.subr.bf16.mxu0 %v2272
    %2394 = vmatpush1.bf16.msra.mxu0 %v2271
    %2395 = vmatprep.subr.bf16.mxu0 %v2276
    %2396 = vmatpush1.bf16.msra.mxu0 %v2275
    %2397 = vmatprep.mubr.bf16.mxu0 %v2016
    %2398 = vmatmul.mubr.bf16.gmra.mrb[0].mxu0 %v2015
    %v2399 = vpop.f32.mrb[0].mxu0
    %v2400 = vadd.f32 0.0, %v2399
    %v2401 = vpop.f32.mrb[0].mxu0
    %v2402 = vadd.f32 0.0, %v2401
    %v2403 = vpop.f32.mrb[0].mxu0
    %v2404 = vadd.f32 0.0, %v2403
    %v2405 = vpop.f32.mrb[0].mxu0
    %v2406 = vadd.f32 0.0, %v2405
    %2407 = vmatprep.mubr.bf16.mxu0 %v2019
    %2408 = vmatmul.mubr.bf16.gmra.mrb[0].mxu0 %v2018
    %v2409 = vpop.f32.mrb[0].mxu0
    %v2410 = vadd.f32 0.0, %v2409
    %v2411 = vpop.f32.mrb[0].mxu0
    %v2412 = vadd.f32 0.0, %v2411
    %v2413 = vpop.f32.mrb[0].mxu0
    %v2414 = vadd.f32 0.0, %v2413
    %v2415 = vpop.f32.mrb[0].mxu0
    %v2416 = vadd.f32 0.0, %v2415
    %2417 = vdwg.mxu0
    %2418 = vmatprep.subr.bf16.mxu0 %v2280
    %2419 = vmatpush1.bf16.msra.mxu0 %v2279
    %2420 = vmatprep.subr.bf16.mxu0 %v2284
    %2421 = vmatpush1.bf16.msra.mxu0 %v2283
    %2422 = vmatprep.subr.bf16.mxu0 0
    %2423 = vmatpush1.bf16.msra.mxu0 0
    %2424 = vmatprep.subr.bf16.mxu0 0
    %2425 = vmatpush1.bf16.msra.mxu0 0
    %2426 = vmatprep.subr.bf16.mxu0 0
    %2427 = vmatpush1.bf16.msra.mxu0 0
    %2428 = vmatprep.subr.bf16.mxu0 0
    %2429 = vmatpush1.bf16.msra.mxu0 0
    %2430 = vmatprep.subr.bf16.mxu0 0
    %2431 = vmatpush1.bf16.msra.mxu0 0
    %2432 = vmatprep.subr.bf16.mxu0 0
    %2433 = vmatpush1.bf16.msra.mxu0 0
    %2434 = vmatprep.subr.bf16.mxu0 0
    %2435 = vmatpush1.bf16.msra.mxu0 0
    %2436 = vmatprep.subr.bf16.mxu0 0
    %2437 = vmatpush1.bf16.msra.mxu0 0
    %2438 = vmatprep.subr.bf16.mxu0 0
    %2439 = vmatpush1.bf16.msra.mxu0 0
    %2440 = vmatprep.subr.bf16.mxu0 0
    %2441 = vmatpush1.bf16.msra.mxu0 0
    %2442 = vmatprep.subr.bf16.mxu0 0
    %2443 = vmatpush1.bf16.msra.mxu0 0
    %2444 = vmatprep.subr.bf16.mxu0 0
    %2445 = vmatpush1.bf16.msra.mxu0 0
    %2446 = vmatprep.subr.bf16.mxu0 0
    %2447 = vmatpush1.bf16.msra.mxu0 0
    %2448 = vmatprep.subr.bf16.mxu0 0
    %2449 = vmatpush1.bf16.msra.mxu0 0
    %2450 = vmatprep.mubr.bf16.mxu0 0
    %2451 = vmatmul.mubr.bf16.gmra.mrb[0].mxu0 %v2360
    %v2452 = vpop.f32.mrb[0].mxu0
    %v2453 = vadd.f32 %v2400, %v2452
    %v2454 = vpop.f32.mrb[0].mxu0
    %v2455 = vadd.f32 %v2402, %v2454
    %v2456 = vpop.f32.mrb[0].mxu0
    %v2457 = vadd.f32 %v2404, %v2456
    %v2458 = vpop.f32.mrb[0].mxu0
    %v2459 = vadd.f32 %v2406, %v2458
    %2460 = vmatprep.mubr.bf16.mxu0 0
    %2461 = vmatmul.mubr.bf16.gmra.mrb[0].mxu0 %v2363
    %v2462 = vpop.f32.mrb[0].mxu0
    %v2463 = vadd.f32 %v2410, %v2462
    %v2464 = vpop.f32.mrb[0].mxu0
    %v2465 = vadd.f32 %v2412, %v2464
    %v2466 = vpop.f32.mrb[0].mxu0
    %v2467 = vadd.f32 %v2414, %v2466
    %v2468 = vpop.f32.mrb[0].mxu0
    %v2469 = vadd.f32 %v2416, %v2468
    %2470 = vdwg.mxu0
    %2471 = vmatprep.subr.bf16.mxu0 %v2218
    %2472 = vmatpush1.bf16.msra.mxu0 %v2217
    %2473 = vmatprep.subr.bf16.mxu0 %v2222
    %2474 = vmatpush1.bf16.msra.mxu0 %v2221
    %2475 = vmatprep.subr.bf16.mxu0 %v2226
    %2476 = vmatpush1.bf16.msra.mxu0 %v2225
    %2477 = vmatprep.subr.bf16.mxu0 %v2230
    %2478 = vmatpush1.bf16.msra.mxu0 %v2229
    %2479 = vmatprep.subr.bf16.mxu0 %v2234
    %2480 = vmatpush1.bf16.msra.mxu0 %v2233
    %2481 = vmatprep.subr.bf16.mxu0 %v2238
    %2482 = vmatpush1.bf16.msra.mxu0 %v2237
    %2483 = vmatprep.subr.bf16.mxu0 %v2242
    %2484 = vmatpush1.bf16.msra.mxu0 %v2241
    %2485 = vmatprep.subr.bf16.mxu0 %v2246
    %2486 = vmatpush1.bf16.msra.mxu0 %v2245
    %2487 = vmatprep.subr.bf16.mxu0 %v2250
    %2488 = vmatpush1.bf16.msra.mxu0 %v2249
    %2489 = vmatprep.subr.bf16.mxu0 %v2254
    %2490 = vmatpush1.bf16.msra.mxu0 %v2253
    %2491 = vmatprep.subr.bf16.mxu0 %v2258
    %2492 = vmatpush1.bf16.msra.mxu0 %v2257
    %2493 = vmatprep.subr.bf16.mxu0 %v2262
    %2494 = vmatpush1.bf16.msra.mxu0 %v2261
    %2495 = vmatprep.subr.bf16.mxu0 %v2266
    %2496 = vmatpush1.bf16.msra.mxu0 %v2265
    %2497 = vmatprep.subr.bf16.mxu0 %v2270
    %2498 = vmatpush1.bf16.msra.mxu0 %v2269
    %2499 = vmatprep.subr.bf16.mxu0 %v2274
    %2500 = vmatpush1.bf16.msra.mxu0 %v2273
    %2501 = vmatprep.subr.bf16.mxu0 %v2278
    %2502 = vmatpush1.bf16.msra.mxu0 %v2277
    %2503 = vmatprep.mubr.bf16.mxu0 %v2016
    %2504 = vmatmul.mubr.bf16.gmra.mrb[0].mxu0 %v2015
    %v2505 = vpop.f32.mrb[0].mxu0
    %v2506 = vadd.f32 0.0, %v2505
    %v2507 = vpop.f32.mrb[0].mxu0
    %v2508 = vadd.f32 0.0, %v2507
    %v2509 = vpop.f32.mrb[0].mxu0
    %v2510 = vadd.f32 0.0, %v2509
    %v2511 = vpop.f32.mrb[0].mxu0
    %v2512 = vadd.f32 0.0, %v2511
    %2513 = vmatprep.mubr.bf16.mxu0 %v2019
    %2514 = vmatmul.mubr.bf16.gmra.mrb[0].mxu0 %v2018
    %v2515 = vpop.f32.mrb[0].mxu0
    %v2516 = vadd.f32 0.0, %v2515
    %v2517 = vpop.f32.mrb[0].mxu0
    %v2518 = vadd.f32 0.0, %v2517
    %v2519 = vpop.f32.mrb[0].mxu0
    %v2520 = vadd.f32 0.0, %v2519
    %v2521 = vpop.f32.mrb[0].mxu0
    %v2522 = vadd.f32 0.0, %v2521
    %2523 = vdwg.mxu0
    %2524 = vmatprep.subr.bf16.mxu0 %v2282
    %2525 = vmatpush1.bf16.msra.mxu0 %v2281
    %2526 = vmatprep.subr.bf16.mxu0 %v2286
    %2527 = vmatpush1.bf16.msra.mxu0 %v2285
    %2528 = vmatprep.subr.bf16.mxu0 0
    %2529 = vmatpush1.bf16.msra.mxu0 0
    %2530 = vmatprep.subr.bf16.mxu0 0
    %2531 = vmatpush1.bf16.msra.mxu0 0
    %2532 = vmatprep.subr.bf16.mxu0 0
    %2533 = vmatpush1.bf16.msra.mxu0 0
    %2534 = vmatprep.subr.bf16.mxu0 0
    %2535 = vmatpush1.bf16.msra.mxu0 0
    %2536 = vmatprep.subr.bf16.mxu0 0
    %2537 = vmatpush1.bf16.msra.mxu0 0
    %2538 = vmatprep.subr.bf16.mxu0 0
    %2539 = vmatpush1.bf16.msra.mxu0 0
    %2540 = vmatprep.subr.bf16.mxu0 0
    %2541 = vmatpush1.bf16.msra.mxu0 0
    %2542 = vmatprep.subr.bf16.mxu0 0
    %2543 = vmatpush1.bf16.msra.mxu0 0
    %2544 = vmatprep.subr.bf16.mxu0 0
    %2545 = vmatpush1.bf16.msra.mxu0 0
    %2546 = vmatprep.subr.bf16.mxu0 0
    %2547 = vmatpush1.bf16.msra.mxu0 0
    %2548 = vmatprep.subr.bf16.mxu0 0
    %2549 = vmatpush1.bf16.msra.mxu0 0
    %2550 = vmatprep.subr.bf16.mxu0 0
    %2551 = vmatpush1.bf16.msra.mxu0 0
    %2552 = vmatprep.subr.bf16.mxu0 0
    %2553 = vmatpush1.bf16.msra.mxu0 0
    %2554 = vmatprep.subr.bf16.mxu0 0
    %2555 = vmatpush1.bf16.msra.mxu0 0
    %2556 = vmatprep.mubr.bf16.mxu0 0
    %2557 = vmatmul.mubr.bf16.gmra.mrb[0].mxu0 %v2360
    %v2558 = vpop.f32.mrb[0].mxu0
    %v2559 = vadd.f32 %v2506, %v2558
    %v2560 = vpop.f32.mrb[0].mxu0
    %v2561 = vadd.f32 %v2508, %v2560
    %v2562 = vpop.f32.mrb[0].mxu0
    %v2563 = vadd.f32 %v2510, %v2562
    %v2564 = vpop.f32.mrb[0].mxu0
    %v2565 = vadd.f32 %v2512, %v2564
    %2566 = vmatprep.mubr.bf16.mxu0 0
    %2567 = vmatmul.mubr.bf16.gmra.mrb[0].mxu0 %v2363
    %v2568 = vpop.f32.mrb[0].mxu0
    %v2569 = vadd.f32 %v2516, %v2568
    %v2570 = vpop.f32.mrb[0].mxu0
    %v2571 = vadd.f32 %v2518, %v2570
    %v2572 = vpop.f32.mrb[0].mxu0
    %v2573 = vadd.f32 %v2520, %v2572
    %v2574 = vpop.f32.mrb[0].mxu0
    %v2575 = vadd.f32 %v2522, %v2574
    %2576 = vdwg.mxu0
    %v2577 = vld [vmem:[%s5] sm:$0xff]
    %v2578 = vld [vmem:[%s5 + $0x8] sm:$0xff]
    %v2579 = vld [vmem:[%s5 + $0x10] sm:$0xff]
    %v2580 = vld [vmem:[%s5 + $0x18] sm:$0xff]
    %2582 = vset.pattern.permute.xlu0 0
    %2583 = vperm.xlu0 %2582, %v2577
    %v2584 = vpop.permute.xlu0 %2583
    %2587 = vset.pattern.permute.xlu0 0
    %2588 = vperm.xlu0 %2587, %v2578
    %v2589 = vpop.permute.xlu0 %2588
    %2592 = vset.pattern.permute.xlu0 0
    %2593 = vperm.xlu0 %2592, %v2579
    %v2594 = vpop.permute.xlu0 %2593
    %2597 = vset.pattern.permute.xlu0 0
    %2598 = vperm.xlu0 %2597, %v2580
    %v2599 = vpop.permute.xlu0 %2598
    %v2601 = vmul.f32 %v2453, %v2584
    %v2602 = vmul.f32 %v2455, %v2584
    %v2603 = vmul.f32 %v2559, %v2584
    %v2604 = vmul.f32 %v2561, %v2584
    %v2605 = vmul.f32 %v2457, %v2589
    %v2606 = vmul.f32 %v2459, %v2589
    %v2607 = vmul.f32 %v2563, %v2589
    %v2608 = vmul.f32 %v2565, %v2589
    %v2609 = vmul.f32 %v2463, %v2594
    %v2610 = vmul.f32 %v2465, %v2594
    %v2611 = vmul.f32 %v2569, %v2594
    %v2612 = vmul.f32 %v2571, %v2594
    %v2613 = vmul.f32 %v2467, %v2599
    %v2614 = vmul.f32 %v2469, %v2599
    %v2615 = vmul.f32 %v2573, %v2599
    %v2616 = vmul.f32 %v2575, %v2599
    %v2617 = vld [vmem:[%s6] sm:$0xff]
    %v2618 = vld [vmem:[%s6 + $0x8] sm:$0xff]
    %v2619 = vld [vmem:[%s6 + $0x10] sm:$0xff]
    %v2620 = vld [vmem:[%s6 + $0x18] sm:$0xff]
    %2622 = vset.pattern.permute.xlu0 0
    %2623 = vperm.xlu0 %2622, %v2617
    %v2624 = vpop.permute.xlu0 %2623
    %2627 = vset.pattern.permute.xlu0 0
    %2628 = vperm.xlu0 %2627, %v2618
    %v2629 = vpop.permute.xlu0 %2628
    %2632 = vset.pattern.permute.xlu0 0
    %2633 = vperm.xlu0 %2632, %v2619
    %v2634 = vpop.permute.xlu0 %2633
    %2637 = vset.pattern.permute.xlu0 0
    %2638 = vperm.xlu0 %2637, %v2620
    %v2639 = vpop.permute.xlu0 %2638
    %v2641 = vadd.f32 %v2601, %v2624
    %v2642 = vadd.f32 %v2602, %v2624
    %v2643 = vadd.f32 %v2603, %v2624
    %v2644 = vadd.f32 %v2604, %v2624
    %v2645 = vadd.f32 %v2605, %v2629
    %v2646 = vadd.f32 %v2606, %v2629
    %v2647 = vadd.f32 %v2607, %v2629
    %v2648 = vadd.f32 %v2608, %v2629
    %v2649 = vadd.f32 %v2609, %v2634
    %v2650 = vadd.f32 %v2610, %v2634
    %v2651 = vadd.f32 %v2611, %v2634
    %v2652 = vadd.f32 %v2612, %v2634
    %v2653 = vadd.f32 %v2613, %v2639
    %v2654 = vadd.f32 %v2614, %v2639
    %v2655 = vadd.f32 %v2615, %v2639
    %v2656 = vadd.f32 %v2616, %v2639
    %v2657 = vld [vmem:[%s0] sm:$0xff]
    %v2658 = vld [vmem:[%s0 + $0x8] sm:$0xff]
    %v2659 = vld [vmem:[%s0 + $0x10] sm:$0xff]
    %v2660 = vld [vmem:[%s0 + $0x18] sm:$0xff]
    %v2661 = vld [vmem:[%s0 + $0x20] sm:$0xff]
    %v2662 = vld [vmem:[%s0 + $0x28] sm:$0xff]
    %v2663 = vld [vmem:[%s0 + $0x30] sm:$0xff]
    %v2664 = vld [vmem:[%s0 + $0x38] sm:$0xff]
    %v2665 = vadd.f32 %v2641, %v2657
    %v2666 = vadd.f32 %v2642, %v2658
    %v2667 = vadd.f32 %v2645, %v2659
    %v2668 = vadd.f32 %v2646, %v2660
    %v2669 = vadd.f32 %v2649, %v2661
    %v2670 = vadd.f32 %v2650, %v2662
    %v2671 = vadd.f32 %v2653, %v2663
    %v2672 = vadd.f32 %v2654, %v2664
    %v2673 = vmax.f32 %v2665, 0.0
    %v2674 = vmax.f32 %v2666, 0.0
    %v2675 = vmax.f32 %v2667, 0.0
    %v2676 = vmax.f32 %v2668, 0.0
    %v2677 = vmax.f32 %v2669, 0.0
    %v2678 = vmax.f32 %v2670, 0.0
    %v2679 = vmax.f32 %v2671, 0.0
    %v2680 = vmax.f32 %v2672, 0.0
    %2681 = vst [vmem:[#allocation9] sm:$0xff] %v2673
    %2682 = vst [vmem:[#allocation9 + $0x8] sm:$0xff] %v2674
    %2683 = vst [vmem:[#allocation9 + $0x10] sm:$0xff] %v2675
    %2684 = vst [vmem:[#allocation9 + $0x18] sm:$0xff] %v2676
    %2685 = vst [vmem:[#allocation9 + $0x20] sm:$0xff] %v2677
    %2686 = vst [vmem:[#allocation9 + $0x28] sm:$0xff] %v2678
    %2687 = vst [vmem:[#allocation9 + $0x30] sm:$0xff] %v2679
    %2688 = vst [vmem:[#allocation9 + $0x38] sm:$0xff] %v2680
    %vm2689 = vcmp.eq.f32.partialorder %v2673, 0.0
    %vm2690 = vcmp.eq.f32.partialorder %v2674, 0.0
    %vm2691 = vcmp.eq.f32.partialorder %v2675, 0.0
    %vm2692 = vcmp.eq.f32.partialorder %v2676, 0.0
    %vm2693 = vcmp.eq.f32.partialorder %v2677, 0.0
    %vm2694 = vcmp.eq.f32.partialorder %v2678, 0.0
    %vm2695 = vcmp.eq.f32.partialorder %v2679, 0.0
    %vm2696 = vcmp.eq.f32.partialorder %v2680, 0.0
    %v2697 = vsel %vm2689, 1.0, 0.0
    %v2698 = vsel %vm2690, 1.0, 0.0
    %v2699 = vsel %vm2691, 1.0, 0.0
    %v2700 = vsel %vm2692, 1.0, 0.0
    %v2701 = vsel %vm2693, 1.0, 0.0
    %v2702 = vsel %vm2694, 1.0, 0.0
    %v2703 = vsel %vm2695, 1.0, 0.0
    %v2704 = vsel %vm2696, 1.0, 0.0
    %v2705 = vadd.f32 %v2697, %v2698
    %v2706 = vadd.f32 %v2705, %v2699
    %v2707 = vadd.f32 %v2706, %v2700
    %v2708 = vadd.f32 %v2707, %v2701
    %v2709 = vadd.f32 %v2708, %v2702
    %v2710 = vadd.f32 %v2709, %v2703
    %v2711 = vadd.f32 %v2710, %v2704
    %2712 = vadd.xlane.f32.xlu0 %v2711
    %v2713 = vpop.xlane.xlu0 %2712
    %v2714 = vrot.slane %v2713, 4
    %v2715 = vadd.f32 %v2713, %v2714
    %v2716 = vrot.slane %v2715, 2
    %v2717 = vadd.f32 %v2715, %v2716
    %v2718 = vrot.slane %v2717, 1
    %v2719 = vadd.f32 %v2717, %v2718
    %s2720 = vtos %v2719
    %s2721 = sadd.f32 %s2720, 0.0
    %v2722 = vld [vmem:[%s134] sm:$0xff]
    %v2723 = vld [vmem:[%s134 + $0x8] sm:$0xff]
    %v2724 = vld [vmem:[%s134 + $0x10] sm:$0xff]
    %v2725 = vld [vmem:[%s134 + $0x18] sm:$0xff]
    %v2726 = vld [vmem:[%s134 + $0x20] sm:$0xff]
    %v2727 = vld [vmem:[%s134 + $0x28] sm:$0xff]
    %v2728 = vld [vmem:[%s134 + $0x30] sm:$0xff]
    %v2729 = vld [vmem:[%s134 + $0x38] sm:$0xff]
    %v2730 = vadd.f32 %v2643, %v2722
    %v2731 = vadd.f32 %v2644, %v2723
    %v2732 = vadd.f32 %v2647, %v2724
    %v2733 = vadd.f32 %v2648, %v2725
    %v2734 = vadd.f32 %v2651, %v2726
    %v2735 = vadd.f32 %v2652, %v2727
    %v2736 = vadd.f32 %v2655, %v2728
    %v2737 = vadd.f32 %v2656, %v2729
    %v2738 = vmax.f32 %v2730, 0.0
    %v2739 = vmax.f32 %v2731, 0.0
    %v2740 = vmax.f32 %v2732, 0.0
    %v2741 = vmax.f32 %v2733, 0.0
    %v2742 = vmax.f32 %v2734, 0.0
    %v2743 = vmax.f32 %v2735, 0.0
    %v2744 = vmax.f32 %v2736, 0.0
    %v2745 = vmax.f32 %v2737, 0.0
    %s2746 = scalar_lea.vmem [#allocation9], 64
    %2747 = vst [vmem:[%s2746] sm:$0xff] %v2738
    %2748 = vst [vmem:[%s2746 + $0x8] sm:$0xff] %v2739
    %2749 = vst [vmem:[%s2746 + $0x10] sm:$0xff] %v2740
    %2750 = vst [vmem:[%s2746 + $0x18] sm:$0xff] %v2741
    %2751 = vst [vmem:[%s2746 + $0x20] sm:$0xff] %v2742
    %2752 = vst [vmem:[%s2746 + $0x28] sm:$0xff] %v2743
    %2753 = vst [vmem:[%s2746 + $0x30] sm:$0xff] %v2744
    %2754 = vst [vmem:[%s2746 + $0x38] sm:$0xff] %v2745
    %vm2755 = vcmp.eq.f32.partialorder %v2738, 0.0
    %vm2756 = vcmp.eq.f32.partialorder %v2739, 0.0
    %vm2757 = vcmp.eq.f32.partialorder %v2740, 0.0
    %vm2758 = vcmp.eq.f32.partialorder %v2741, 0.0
    %vm2759 = vcmp.eq.f32.partialorder %v2742, 0.0
    %vm2760 = vcmp.eq.f32.partialorder %v2743, 0.0
    %vm2761 = vcmp.eq.f32.partialorder %v2744, 0.0
    %vm2762 = vcmp.eq.f32.partialorder %v2745, 0.0
    %v2763 = vsel %vm2755, 1.0, 0.0
    %v2764 = vsel %vm2756, 1.0, 0.0
    %v2765 = vsel %vm2757, 1.0, 0.0
    %v2766 = vsel %vm2758, 1.0, 0.0
    %v2767 = vsel %vm2759, 1.0, 0.0
    %v2768 = vsel %vm2760, 1.0, 0.0
    %v2769 = vsel %vm2761, 1.0, 0.0
    %v2770 = vsel %vm2762, 1.0, 0.0
    %v2771 = vadd.f32 %v2763, %v2764
    %v2772 = vadd.f32 %v2771, %v2765
    %v2773 = vadd.f32 %v2772, %v2766
    %v2774 = vadd.f32 %v2773, %v2767
    %v2775 = vadd.f32 %v2774, %v2768
    %v2776 = vadd.f32 %v2775, %v2769
    %v2777 = vadd.f32 %v2776, %v2770
    %2778 = vadd.xlane.f32.xlu0 %v2777
    %v2779 = vpop.xlane.xlu0 %2778
    %v2780 = vrot.slane %v2779, 4
    %v2781 = vadd.f32 %v2779, %v2780
    %v2782 = vrot.slane %v2781, 2
    %v2783 = vadd.f32 %v2781, %v2782
    %v2784 = vrot.slane %v2783, 1
    %v2785 = vadd.f32 %v2783, %v2784
    %s2786 = vtos %v2785
    %s2787 = sadd.f32 %s2721, %s2786
    %s2788 = scvt.f32.s32.to.zero.pseudo %s1582
    %s2789 = scalar_lea.smem [#allocation10], 0
    %2790 = sst [smem:[%s2789]] %s2788
    %s2791 = scvt.f32.s32.to.zero.pseudo %s2787
    %s2792 = scalar_lea.smem [#allocation10], 1
    %2793 = sst [smem:[%s2792]] %s2791
    // Predicated region
    $region42: #{tpu_custom_call.1} parent=1 // pred_check
      _
    $region43: #{tpu_custom_call.1} parent=1 // pred_check_branch
      %2795 = sbr.rel (0) target = $region45
    $region44: #{tpu_custom_call.1} parent=1 // pred_region
      %s2797 = ssub.s32 2048, 2048
      %2798 = vsyncadd [#allocation5], %s2797
      %s2799 = sshll.u32 [#allocation9], 4
      %s2800 = int_to_ptr.vmem [resolvable:$true] %s2799
      %2805 = dma.vmem_to_hbm [thread:$0]  %s2800, 2048, %s7, [#allocation5], 256, 256, 16
    $region45: #{tpu_custom_call.1} parent=1 // pred_fallthru
      _
    // Predicated region
    $region46: #{tpu_custom_call.1} parent=1 // pred_check
      _
    $region47: #{tpu_custom_call.1} parent=1 // pred_check_branch
      %2807 = sbr.rel (0) target = $region49
    $region48: #{tpu_custom_call.1} parent=1 // pred_region
      %s2809 = ssub.s32 16, 16
      %2810 = vsyncadd [#allocation6], %s2809
      %2813 = dma.smem_to_hbm [#allocation10], 16, %s8, [#allocation6]
    $region49: #{tpu_custom_call.1} parent=1 // pred_fallthru
      _
    // Predicated region
    $region50: #{tpu_custom_call.1} parent=1 // pred_check
      _
    $region51: #{tpu_custom_call.1} parent=1 // pred_check_branch
      %2815 = sbr.rel (0) target = $region53
    $region52: #{tpu_custom_call.1} parent=1 // pred_region
      %2816 = dma.done [#allocation5], 2048
    $region53: #{tpu_custom_call.1} parent=1 // pred_fallthru
      _
    // Predicated region
    $region54: #{tpu_custom_call.1} parent=1 // pred_check
      _
    $region55: #{tpu_custom_call.1} parent=1 // pred_check_branch
      %2818 = sbr.rel (0) target = $region57
    $region56: #{tpu_custom_call.1} parent=1 // pred_region
      %2819 = dma.done [#allocation6], 16
    $region57: #{tpu_custom_call.1} parent=1 // pred_fallthru
      _
    %2820 = sfence
    %2821 = vsyncpa [#allocation4], 1
    %2822 = vsyncpa [#allocation8], 1
    %2823 = vsyncpa [#allocation5], 1
    %2824 = vsyncpa [#allocation6], 1

</llo_original>
